<compile_context>
chip_gen: v7x
topology: tpu7x:2x2x1
jax: 0.10.0
libtpu: 0.0.40
codegen_flags: <defaults>
</compile_context>

<pallas_src>
import functools

import jax
import jax.numpy as jnp
from jax.experimental import pallas as pl
from jax.experimental.pallas import tpu as pltpu


# --------------------------------------------------------------------------- #
# Kernel 1 — person kernel.  Blocks:
#   x_ref    : (RB, T*H)   RB = block_b * N rows of person features
#   tw1_ref  : (T*H, H)    time-projection layer-1 weight (resident)
#   tw2_ref  : (H, H)      time-projection layer-2 weight (resident)
#   w1ij_ref : (H, 2H)     fused [W1_i | W1_j] interaction layer-1 weight
#   b12_ref  : (2, H)      [t_b1, t_b2] (f32)
#   b1w_ref  : (1, 2H)     [i_b1 | 0]   (f32)
#   pf_ref   : (RB, H)     person_feature output (input dtype)
#   ac_ref   : (RB, 2H)    [a | c] per person (compute dtype), a includes +i_b1
# --------------------------------------------------------------------------- #
def _person_kernel(x_ref, tw1_ref, tw2_ref, w1ij_ref, b12_ref, b1w_ref,
                   pf_ref, ac_ref):
    x = x_ref[...]                                            # (RB, T*H)
    t_b1 = b12_ref[0:1, :]                                    # (1, H) f32
    t_b2 = b12_ref[1:2, :]

    h1 = jnp.dot(x, tw1_ref[...], preferred_element_type=jnp.float32) + t_b1
    h1 = jnp.maximum(h1, 0.0)                                 # ReLU in f32 (VPU)
    pf = jnp.dot(h1.astype(tw2_ref.dtype), tw2_ref[...],
                 preferred_element_type=jnp.float32) + t_b2   # (RB, H) f32
    pf_ref[...] = pf.astype(pf_ref.dtype)

    ac = jnp.dot(pf.astype(w1ij_ref.dtype), w1ij_ref[...],
                 preferred_element_type=jnp.float32) + b1w_ref[...]   # (RB, 2H)
    ac_ref[...] = ac.astype(ac_ref.dtype)


# --------------------------------------------------------------------------- #
# Kernel 2 — pair kernel.  Blocks:
#   ac_ref   : (BB, N*2H)  per batch row b: [a_0|c_0|a_1|c_1|...] along lanes
#   w2bd_ref : (N*H, N*H)  block-diagonal repeat of i_w2 (resident)
#   b2_ref   : (1, N*H)    i_b2 tiled N times along lanes (f32)
#   rel_ref  : (BB, N*N*H) relation features for all ordered pairs (i, j)
# --------------------------------------------------------------------------- #
def _pair_kernel(ac_ref, w2bd_ref, b2_ref, rel_ref, *, n_person, hid):
    acw = ac_ref[...].astype(jnp.float32)                     # (BB, N*2H)
    w2bd = w2bd_ref[...]                                      # (N*H, N*H)
    b2 = b2_ref[...]                                          # (1, N*H)

    # c_w[:, j*H:(j+1)*H] = c of person j   (static lane slices + lane concat)
    c_w = jnp.concatenate(
        [acw[:, j * 2 * hid + hid:(j + 1) * 2 * hid] for j in range(n_person)],
        axis=-1)                                              # (BB, N*H)

    parts = []
    for i in range(n_person):                                 # N is small & static
        a_i = acw[:, i * 2 * hid:i * 2 * hid + hid]           # (BB, H)
        a_rep = jnp.concatenate([a_i] * n_person, axis=-1)    # (BB, N*H)
        hp = jnp.maximum(a_rep + c_w, 0.0)                    # pair hidden state, f32
        rel_i = jnp.dot(hp.astype(w2bd.dtype), w2bd,
                        preferred_element_type=jnp.float32) + b2   # (BB, N*H)
        parts.append(rel_i.astype(rel_ref.dtype))
    rel_ref[...] = jnp.concatenate(parts, axis=-1)            # one lane-dense store


# --------------------------------------------------------------------------- #
# Batch-block size: largest divisor of B that keeps the matmul M dimension
# (block_b * N) at a few hundred rows, prefers >= 2 grid steps (v7x megacore)
# and sublane-aligned row counts.
# --------------------------------------------------------------------------- #
def _choose_block_b(B, N, target_rows=512):
    divs = [d for d in range(1, B + 1) if B % d == 0]
    multi = [d for d in divs if B // d >= 2] or divs
    fitting = [d for d in multi if d * N <= target_rows] or [min(multi)]
    aligned = [d for d in fitting if (d * N) % 8 == 0]
    return max(aligned or fitting)


# --------------------------------------------------------------------------- #
# One-time parameter packing (hoist out of the per-call jit when params are
# static across calls).  Weights stored (in, out); biases stay f32.
# --------------------------------------------------------------------------- #
def pack_relation_params(params, N, compute_dtype=jnp.bfloat16):
    H = params["t_w2"].shape[0]
    cdt = compute_dtype
    w1ij = jnp.concatenate([params["i_w1"][:H, :], params["i_w1"][H:, :]], axis=1)  # (H, 2H)
    b12 = jnp.concatenate([params["t_b1"], params["t_b2"]], axis=0)                 # (2, H)
    b1w = jnp.concatenate([params["i_b1"],
                           jnp.zeros((1, H), jnp.float32)], axis=1)                 # (1, 2H)
    w2bd = jnp.kron(jnp.eye(N, dtype=jnp.float32), params["i_w2"])                  # (N*H, N*H)
    b2w = jnp.tile(params["i_b2"], (1, N))                                          # (1, N*H)
    return dict(
        t_w1=params["t_w1"].astype(cdt),
        t_w2=params["t_w2"].astype(cdt),
        w1ij=w1ij.astype(cdt),
        b12=b12.astype(jnp.float32),
        b1w=b1w.astype(jnp.float32),
        w2bd=w2bd.astype(cdt),
        b2w=b2w.astype(jnp.float32),
    )


# --------------------------------------------------------------------------- #
# Relation_Trans.forward
# Returns (relation_feature, person_feats_withT, person_feature) like PyTorch.
# --------------------------------------------------------------------------- #
def relation_trans_forward(person_feats_withT, packed):
    B, N, T, H = person_feats_withT.shape
    cdt = packed["t_w1"].dtype
    out_dt = person_feats_withT.dtype

    # self.RM (STTR_trans): identity passthrough (see TODO above); .detach()
    feats = jax.lax.stop_gradient(person_feats_withT)

    BB = _choose_block_b(B, N)
    G = B // BB
    RB = BB * N

    x2 = feats.reshape(B * N, T * H).astype(cdt)

    # ---------------- kernel 1: per-person MLPs ------------------------------
    pf_rows, ac_rows = pl.pallas_call(
        _person_kernel,
        out_shape=(
            jax.ShapeDtypeStruct((B * N, H), out_dt),
            jax.ShapeDtypeStruct((B * N, 2 * H), cdt),
        ),
        grid=(G,),
        in_specs=[
            pl.BlockSpec((RB, T * H), lambda g: (g, 0)),
            pl.BlockSpec((T * H, H), lambda g: (0, 0)),
            pl.BlockSpec((H, H), lambda g: (0, 0)),
            pl.BlockSpec((H, 2 * H), lambda g: (0, 0)),
            pl.BlockSpec((2, H), lambda g: (0, 0)),
            pl.BlockSpec((1, 2 * H), lambda g: (0, 0)),
        ],
        out_specs=(
            pl.BlockSpec((RB, H), lambda g: (g, 0)),
            pl.BlockSpec((RB, 2 * H), lambda g: (g, 0)),
        ),
        compiler_params=pltpu.CompilerParams(dimension_semantics=("parallel",)),
    )(x2, packed["t_w1"], packed["t_w2"], packed["w1ij"],
      packed["b12"], packed["b1w"])

    # ---------------- kernel 2: pair formation + interaction layer 2 ---------
    acw = ac_rows.reshape(B, N * 2 * H)          # free reinterpretation in HBM
    rel_wide = pl.pallas_call(
        functools.partial(_pair_kernel, n_person=N, hid=H),
        out_shape=jax.ShapeDtypeStruct((B, N * N * H), out_dt),
        grid=(G,),
        in_specs=[
            pl.BlockSpec((BB, N * 2 * H), lambda g: (g, 0)),
            pl.BlockSpec((N * H, N * H), lambda g: (0, 0)),
            pl.BlockSpec((1, N * H), lambda g: (0, 0)),
        ],
        out_specs=pl.BlockSpec((BB, N * N * H), lambda g: (g, 0)),
        compiler_params=pltpu.CompilerParams(dimension_semantics=("parallel",)),
    )(acw, packed["w2bd"], packed["b2w"])

    person_feature = pf_rows.reshape(B, N, H)
    rel_full = rel_wide.reshape(B, N * N, H)
    rel_idx = jnp.asarray([N * i + j for i in range(N) for j in range(N) if j != i],
                          dtype=jnp.int32)
    relation_feature = rel_full[:, rel_idx, :]    # drop diagonal (i == i) pairs

    return relation_feature, feats, person_feature


relation_trans_forward_jit = jax.jit(relation_trans_forward)


# --------------------------------------------------------------------------- #
# References for correctness checks.
# --------------------------------------------------------------------------- #
def _reference_forward_f32(x, params):
    """Pure-f32 pure-JAX reference (original module semantics)."""
    B, N, T, H = x.shape
    pf = x.reshape(B * N, T * H) @ params["t_w1"] + params["t_b1"]
    pf = jnp.maximum(pf, 0.0)
    pf = (pf @ params["t_w2"] + params["t_b2"]).reshape(B, N, H)
    i_idx = jnp.asarray([i for i in range(N) for j in range(N) if j != i], jnp.int32)
    j_idx = jnp.asarray([j for i in range(N) for j in range(N) if j != i], jnp.int32)
    pairs = jnp.concatenate([pf[:, i_idx, :], pf[:, j_idx, :]], axis=-1)
    h = pairs.reshape(B * N * (N - 1), 2 * H) @ params["i_w1"] + params["i_b1"]
    h = jnp.maximum(h, 0.0)
    rel = (h @ params["i_w2"] + params["i_b2"]).reshape(B, N * (N - 1), H)
    return rel, x, pf


def _reference_forward_matched(x, packed, params):
    """Same math with the same bf16 cast points as the kernels (tight check)."""
    B, N, T, H = x.shape
    cdt = packed["t_w1"].dtype
    x2 = x.reshape(B * N, T * H).astype(cdt)
    h1 = jnp.dot(x2, packed["t_w1"], preferred_element_type=jnp.float32) + params["t_b1"]
    h1 = jnp.maximum(h1, 0.0)
    pf = jnp.dot(h1.astype(cdt), packed["t_w2"],
                 preferred_element_type=jnp.float32) + params["t_b2"]
    ac = (jnp.dot(pf.astype(cdt), packed["w1ij"],
                  preferred_element_type=jnp.float32) + packed["b1w"]).astype(cdt)
    a = ac[:, :H].astype(jnp.float32).reshape(B, N, 1, H)
    c = ac[:, H:].astype(jnp.float32).reshape(B, 1, N, H)
    hp = jnp.maximum(a + c, 0.0).reshape(B * N * N, H)
    rel = jnp.dot(hp.astype(cdt), params["i_w2"].astype(cdt),
                  preferred_element_type=jnp.float32) + params["i_b2"]
    rel = rel.reshape(B, N * N, H)
    idx = jnp.asarray([N * i + j for i in range(N) for j in range(N) if j != i], jnp.int32)
    return rel[:, idx, :].astype(x.dtype), pf.reshape(B, N, H).astype(x.dtype)


# --------------------------------------------------------------------------- #
# Deterministic parameter init (PyTorch nn.Linear style uniform(-1/sqrt(fan_in)))
# --------------------------------------------------------------------------- #
def init_params(key, T, H):
    def linear(key, fan_in, fan_out):
        kw, kb = jax.random.split(key)
        bound = 1.0 / jnp.sqrt(fan_in)
        w = jax.random.uniform(kw, (fan_in, fan_out), jnp.float32, -bound, bound)
        b = jax.random.uniform(kb, (1, fan_out), jnp.float32, -bound, bound)
        return w, b

    k = jax.random.split(key, 4)
    t_w1, t_b1 = linear(k[0], T * H, H)      # time_track_projection  Linear(T*H -> H)
    t_w2, t_b2 = linear(k[1], H, H)          #                        Linear(H   -> H)
    i_w1, i_b1 = linear(k[2], 2 * H, H)      # interaction projection Linear(2H  -> H)
    i_w2, i_b2 = linear(k[3], H, H)          #                        Linear(H   -> H)
    return dict(t_w1=t_w1, t_b1=t_b1, t_w2=t_w2, t_b2=t_b2,
                i_w1=i_w1, i_b1=i_b1, i_w2=i_w2, i_b2=i_b2)


if __name__ == "__main__":
    # Small shapes consistent with the module: B=128 clips, N=3 persons,
    # T=4 frames, hidden=32.
    B, N, T, H = 128, 3, 4, 32
    key = jax.random.PRNGKey(0)
    k_x, k_p = jax.random.split(key)

    x = jax.random.normal(k_x, (B, N, T, H), dtype=jnp.float32)
    params = init_params(k_p, T, H)
    packed = pack_relation_params(params, N, compute_dtype=jnp.bfloat16)

    relation_feature, person_feats_withT, person_feature = relation_trans_forward_jit(
        x, packed)
    jax.block_until_ready((relation_feature, person_feats_withT, person_feature))

    assert relation_feature.shape == (B, N * (N - 1), H)
    assert person_feats_withT.shape == (B, N, T, H)
    assert person_feature.shape == (B, N, H)

    # Tight check vs a reference using identical bf16 cast points / f32 accumulation.
    rel_m, pf_m = _reference_forward_matched(x, packed, params)
    assert bool(jnp.allclose(person_feature, pf_m, atol=2e-3, rtol=2e-3))
    assert bool(jnp.allclose(relation_feature, rel_m, atol=2e-3, rtol=2e-3))

    # Loose sanity check vs the pure-f32 reference (bounds the bf16 quantization).
    rel_f, feats_f, pf_f = _reference_forward_f32(x, params)
    assert bool(jnp.allclose(person_feature, pf_f, atol=5e-2, rtol=5e-2))
    assert bool(jnp.allclose(relation_feature, rel_f, atol=5e-2, rtol=5e-2))
    assert bool(jnp.array_equal(person_feats_withT, feats_f))

    print("KERNEL_OK")
</pallas_src>

<mosaic_0001>
module attributes {stable_mosaic.version = 11 : i64} {
  func.func @_person_kernel(%arg0: i32, %arg1: memref<192x128xbf16, #tpu.memory_space<vmem>>, %arg2: memref<128x32xbf16, #tpu.memory_space<vmem>>, %arg3: memref<32x32xbf16, #tpu.memory_space<vmem>>, %arg4: memref<32x64xbf16, #tpu.memory_space<vmem>>, %arg5: memref<2x32xf32, #tpu.memory_space<vmem>>, %arg6: memref<1x64xf32, #tpu.memory_space<vmem>>, %arg7: memref<192x32xf32, #tpu.memory_space<vmem>>, %arg8: memref<192x64xbf16, #tpu.memory_space<vmem>>) attributes {dimension_semantics = [#tpu.dimension_semantics<parallel>], iteration_bounds = array<i64: 2>, scalar_prefetch = 0 : i64, scratch_operands = 0 : i64, tpu.core_type = #tpu.core_type<tc>, window_params = [{transform_indices = @transform_0, window_bounds = array<i64: 192, 128>}, {pipeline_mode = #tpu.pipeline_mode<synchronous>, transform_indices = @transform_1, window_bounds = array<i64: 128, 32>}, {pipeline_mode = #tpu.pipeline_mode<synchronous>, transform_indices = @transform_2, window_bounds = array<i64: 32, 32>}, {pipeline_mode = #tpu.pipeline_mode<synchronous>, transform_indices = @transform_3, window_bounds = array<i64: 32, 64>}, {pipeline_mode = #tpu.pipeline_mode<synchronous>, transform_indices = @transform_4, window_bounds = array<i64: 2, 32>}, {pipeline_mode = #tpu.pipeline_mode<synchronous>, transform_indices = @transform_5, window_bounds = array<i64: 1, 64>}, {transform_indices = @transform_6, window_bounds = array<i64: 192, 32>}, {transform_indices = @transform_7, window_bounds = array<i64: 192, 64>}]} {
    %c0 = arith.constant 0 : index
    %c0_0 = arith.constant 0 : index
    %0 = vector.load %arg1[%c0, %c0_0] : memref<192x128xbf16, #tpu.memory_space<vmem>>, vector<192x128xbf16>
    %c0_1 = arith.constant 0 : index
    %c0_2 = arith.constant 0 : index
    %1 = vector.load %arg5[%c0_1, %c0_2] : memref<2x32xf32, #tpu.memory_space<vmem>>, vector<1x32xf32>
    %c1 = arith.constant 1 : index
    %c0_3 = arith.constant 0 : index
    %2 = vector.load %arg5[%c1, %c0_3] : memref<2x32xf32, #tpu.memory_space<vmem>>, vector<1x32xf32>
    %c0_4 = arith.constant 0 : index
    %c0_5 = arith.constant 0 : index
    %3 = vector.load %arg2[%c0_4, %c0_5] : memref<128x32xbf16, #tpu.memory_space<vmem>>, vector<128x32xbf16>
    %cst = arith.constant dense<0.000000e+00> : vector<192x32xf32>
    %4 = tpu.matmul %0, %3, %cst {dimension_numbers = #tpu.dot_dimension_numbers<[1], [0], [0], [1], [0, 0, 1, 1], [], []>} : vector<192x128xbf16>, vector<128x32xbf16>, vector<192x32xf32> -> vector<192x32xf32>
    %5 = vector.broadcast %1 : vector<1x32xf32> to vector<192x32xf32>
    %6 = arith.addf %4, %5 : vector<192x32xf32>
    %cst_6 = arith.constant 0.000000e+00 : f32
    %7 = vector.broadcast %cst_6 : f32 to vector<192x32xf32>
    %8 = arith.maximumf %6, %7 : vector<192x32xf32>
    %9 = arith.truncf %8 : vector<192x32xf32> to vector<192x32xbf16>
    %c0_7 = arith.constant 0 : index
    %c0_8 = arith.constant 0 : index
    %10 = vector.load %arg3[%c0_7, %c0_8] : memref<32x32xbf16, #tpu.memory_space<vmem>>, vector<32x32xbf16>
    %cst_9 = arith.constant dense<0.000000e+00> : vector<192x32xf32>
    %11 = tpu.matmul %9, %10, %cst_9 {dimension_numbers = #tpu.dot_dimension_numbers<[1], [0], [0], [1], [0, 0, 1, 1], [], []>} : vector<192x32xbf16>, vector<32x32xbf16>, vector<192x32xf32> -> vector<192x32xf32>
    %12 = vector.broadcast %2 : vector<1x32xf32> to vector<192x32xf32>
    %13 = arith.addf %11, %12 : vector<192x32xf32>
    %c0_10 = arith.constant 0 : index
    %c0_11 = arith.constant 0 : index
    %14 = vector.load %arg7[%c0_10, %c0_11] : memref<192x32xf32, #tpu.memory_space<vmem>>, vector<192x32xf32>
    tpu.vector_store %arg7[%c0_10, %c0_11], %13 {strides = array<i32>} : memref<192x32xf32, #tpu.memory_space<vmem>>, vector<192x32xf32>,
    %15 = arith.truncf %13 : vector<192x32xf32> to vector<192x32xbf16>
    %c0_12 = arith.constant 0 : index
    %c0_13 = arith.constant 0 : index
    %16 = vector.load %arg4[%c0_12, %c0_13] : memref<32x64xbf16, #tpu.memory_space<vmem>>, vector<32x64xbf16>
    %cst_14 = arith.constant dense<0.000000e+00> : vector<192x64xf32>
    %17 = tpu.matmul %15, %16, %cst_14 {dimension_numbers = #tpu.dot_dimension_numbers<[1], [0], [0], [1], [0, 0, 1, 1], [], []>} : vector<192x32xbf16>, vector<32x64xbf16>, vector<192x64xf32> -> vector<192x64xf32>
    %c0_15 = arith.constant 0 : index
    %c0_16 = arith.constant 0 : index
    %18 = vector.load %arg6[%c0_15, %c0_16] : memref<1x64xf32, #tpu.memory_space<vmem>>, vector<1x64xf32>
    %19 = vector.broadcast %18 : vector<1x64xf32> to vector<192x64xf32>
    %20 = arith.addf %17, %19 : vector<192x64xf32>
    %21 = arith.truncf %20 : vector<192x64xf32> to vector<192x64xbf16>
    %c0_17 = arith.constant 0 : index
    %c0_18 = arith.constant 0 : index
    %22 = vector.load %arg8[%c0_17, %c0_18] : memref<192x64xbf16, #tpu.memory_space<vmem>>, vector<192x64xbf16>
    tpu.vector_store %arg8[%c0_17, %c0_18], %21 {strides = array<i32>} : memref<192x64xbf16, #tpu.memory_space<vmem>>, vector<192x64xbf16>,
    return
  }
  func.func @transform_0(%arg0: i32) -> (i32, i32) {
    %c0_i32 = arith.constant 0 : i32
    %c0_i32_0 = arith.constant 0 : i32
    return %arg0, %c0_i32 : i32, i32
  }
  func.func @transform_1(%arg0: i32) -> (i32, i32) {
    %c0_i32 = arith.constant 0 : i32
    %c0_i32_0 = arith.constant 0 : i32
    %c0_i32_1 = arith.constant 0 : i32
    return %c0_i32, %c0_i32_0 : i32, i32
  }
  func.func @transform_2(%arg0: i32) -> (i32, i32) {
    %c0_i32 = arith.constant 0 : i32
    %c0_i32_0 = arith.constant 0 : i32
    %c0_i32_1 = arith.constant 0 : i32
    return %c0_i32, %c0_i32_0 : i32, i32
  }
  func.func @transform_3(%arg0: i32) -> (i32, i32) {
    %c0_i32 = arith.constant 0 : i32
    %c0_i32_0 = arith.constant 0 : i32
    %c0_i32_1 = arith.constant 0 : i32
    return %c0_i32, %c0_i32_0 : i32, i32
  }
  func.func @transform_4(%arg0: i32) -> (i32, i32) {
    %c0_i32 = arith.constant 0 : i32
    %c0_i32_0 = arith.constant 0 : i32
    %c0_i32_1 = arith.constant 0 : i32
    return %c0_i32, %c0_i32_0 : i32, i32
  }
  func.func @transform_5(%arg0: i32) -> (i32, i32) {
    %c0_i32 = arith.constant 0 : i32
    %c0_i32_0 = arith.constant 0 : i32
    %c0_i32_1 = arith.constant 0 : i32
    return %c0_i32, %c0_i32_0 : i32, i32
  }
  func.func @transform_6(%arg0: i32) -> (i32, i32) {
    %c0_i32 = arith.constant 0 : i32
    %c0_i32_0 = arith.constant 0 : i32
    return %arg0, %c0_i32 : i32, i32
  }
  func.func @transform_7(%arg0: i32) -> (i32, i32) {
    %c0_i32 = arith.constant 0 : i32
    %c0_i32_0 = arith.constant 0 : i32
    return %arg0, %c0_i32 : i32, i32
  }
}

module attributes {stable_mosaic.version = 11 : i64} {
  func.func @_pair_kernel(%arg0: i32, %arg1: memref<64x192xbf16, #tpu.memory_space<vmem>>, %arg2: memref<96x96xbf16, #tpu.memory_space<vmem>>, %arg3: memref<1x96xf32, #tpu.memory_space<vmem>>, %arg4: memref<64x288xf32, #tpu.memory_space<vmem>>) attributes {dimension_semantics = [#tpu.dimension_semantics<parallel>], iteration_bounds = array<i64: 2>, scalar_prefetch = 0 : i64, scratch_operands = 0 : i64, tpu.core_type = #tpu.core_type<tc>, window_params = [{transform_indices = @transform_0, window_bounds = array<i64: 64, 192>}, {pipeline_mode = #tpu.pipeline_mode<synchronous>, transform_indices = @transform_1, window_bounds = array<i64: 96, 96>}, {pipeline_mode = #tpu.pipeline_mode<synchronous>, transform_indices = @transform_2, window_bounds = array<i64: 1, 96>}, {transform_indices = @transform_3, window_bounds = array<i64: 64, 288>}]} {
    %c0 = arith.constant 0 : index
    %c0_0 = arith.constant 0 : index
    %0 = vector.load %arg1[%c0, %c0_0] : memref<64x192xbf16, #tpu.memory_space<vmem>>, vector<64x192xbf16>
    %1 = arith.extf %0 : vector<64x192xbf16> to vector<64x192xf32>
    %c0_1 = arith.constant 0 : index
    %c0_2 = arith.constant 0 : index
    %2 = vector.load %arg2[%c0_1, %c0_2] : memref<96x96xbf16, #tpu.memory_space<vmem>>, vector<96x96xbf16>
    %c0_3 = arith.constant 0 : index
    %c0_4 = arith.constant 0 : index
    %3 = vector.load %arg3[%c0_3, %c0_4] : memref<1x96xf32, #tpu.memory_space<vmem>>, vector<1x96xf32>
    %4 = vector.extract_strided_slice %1 {offsets = [0, 32], sizes = [64, 32], strides = [1, 1]} : vector<64x192xf32> to vector<64x32xf32>
    %5 = vector.extract_strided_slice %1 {offsets = [0, 96], sizes = [64, 32], strides = [1, 1]} : vector<64x192xf32> to vector<64x32xf32>
    %6 = vector.extract_strided_slice %1 {offsets = [0, 160], sizes = [64, 32], strides = [1, 1]} : vector<64x192xf32> to vector<64x32xf32>
    %7 = tpu.concatenate %4, %5, %6 in 1 : vector<64x32xf32>, vector<64x32xf32>, vector<64x32xf32> -> vector<64x96xf32>
    %8 = vector.extract_strided_slice %1 {offsets = [0, 0], sizes = [64, 32], strides = [1, 1]} : vector<64x192xf32> to vector<64x32xf32>
    %9 = tpu.concatenate %8, %8, %8 in 1 : vector<64x32xf32>, vector<64x32xf32>, vector<64x32xf32> -> vector<64x96xf32>
    %10 = arith.addf %9, %7 : vector<64x96xf32>
    %cst = arith.constant 0.000000e+00 : f32
    %11 = vector.broadcast %cst : f32 to vector<64x96xf32>
    %12 = arith.maximumf %10, %11 : vector<64x96xf32>
    %13 = arith.truncf %12 : vector<64x96xf32> to vector<64x96xbf16>
    %cst_5 = arith.constant dense<0.000000e+00> : vector<64x96xf32>
    %14 = tpu.matmul %13, %2, %cst_5 {dimension_numbers = #tpu.dot_dimension_numbers<[1], [0], [0], [1], [0, 0, 1, 1], [], []>} : vector<64x96xbf16>, vector<96x96xbf16>, vector<64x96xf32> -> vector<64x96xf32>
    %15 = vector.broadcast %3 : vector<1x96xf32> to vector<64x96xf32>
    %16 = arith.addf %14, %15 : vector<64x96xf32>
    %17 = vector.extract_strided_slice %1 {offsets = [0, 64], sizes = [64, 32], strides = [1, 1]} : vector<64x192xf32> to vector<64x32xf32>
    %18 = tpu.concatenate %17, %17, %17 in 1 : vector<64x32xf32>, vector<64x32xf32>, vector<64x32xf32> -> vector<64x96xf32>
    %19 = arith.addf %18, %7 : vector<64x96xf32>
    %cst_6 = arith.constant 0.000000e+00 : f32
    %20 = vector.broadcast %cst_6 : f32 to vector<64x96xf32>
    %21 = arith.maximumf %19, %20 : vector<64x96xf32>
    %22 = arith.truncf %21 : vector<64x96xf32> to vector<64x96xbf16>
    %cst_7 = arith.constant dense<0.000000e+00> : vector<64x96xf32>
    %23 = tpu.matmul %22, %2, %cst_7 {dimension_numbers = #tpu.dot_dimension_numbers<[1], [0], [0], [1], [0, 0, 1, 1], [], []>} : vector<64x96xbf16>, vector<96x96xbf16>, vector<64x96xf32> -> vector<64x96xf32>
    %24 = vector.broadcast %3 : vector<1x96xf32> to vector<64x96xf32>
    %25 = arith.addf %23, %24 : vector<64x96xf32>
    %26 = vector.extract_strided_slice %1 {offsets = [0, 128], sizes = [64, 32], strides = [1, 1]} : vector<64x192xf32> to vector<64x32xf32>
    %27 = tpu.concatenate %26, %26, %26 in 1 : vector<64x32xf32>, vector<64x32xf32>, vector<64x32xf32> -> vector<64x96xf32>
    %28 = arith.addf %27, %7 : vector<64x96xf32>
    %cst_8 = arith.constant 0.000000e+00 : f32
    %29 = vector.broadcast %cst_8 : f32 to vector<64x96xf32>
    %30 = arith.maximumf %28, %29 : vector<64x96xf32>
    %31 = arith.truncf %30 : vector<64x96xf32> to vector<64x96xbf16>
    %cst_9 = arith.constant dense<0.000000e+00> : vector<64x96xf32>
    %32 = tpu.matmul %31, %2, %cst_9 {dimension_numbers = #tpu.dot_dimension_numbers<[1], [0], [0], [1], [0, 0, 1, 1], [], []>} : vector<64x96xbf16>, vector<96x96xbf16>, vector<64x96xf32> -> vector<64x96xf32>
    %33 = vector.broadcast %3 : vector<1x96xf32> to vector<64x96xf32>
    %34 = arith.addf %32, %33 : vector<64x96xf32>
    %35 = tpu.concatenate %16, %25, %34 in 1 : vector<64x96xf32>, vector<64x96xf32>, vector<64x96xf32> -> vector<64x288xf32>
    %c0_10 = arith.constant 0 : index
    %c0_11 = arith.constant 0 : index
    %36 = vector.load %arg4[%c0_10, %c0_11] : memref<64x288xf32, #tpu.memory_space<vmem>>, vector<64x288xf32>
    tpu.vector_store %arg4[%c0_10, %c0_11], %35 {strides = array<i32>} : memref<64x288xf32, #tpu.memory_space<vmem>>, vector<64x288xf32>,
    return
  }
  func.func @transform_0(%arg0: i32) -> (i32, i32) {
    %c0_i32 = arith.constant 0 : i32
    %c0_i32_0 = arith.constant 0 : i32
    return %arg0, %c0_i32 : i32, i32
  }
  func.func @transform_1(%arg0: i32) -> (i32, i32) {
    %c0_i32 = arith.constant 0 : i32
    %c0_i32_0 = arith.constant 0 : i32
    %c0_i32_1 = arith.constant 0 : i32
    return %c0_i32, %c0_i32_0 : i32, i32
  }
  func.func @transform_2(%arg0: i32) -> (i32, i32) {
    %c0_i32 = arith.constant 0 : i32
    %c0_i32_0 = arith.constant 0 : i32
    %c0_i32_1 = arith.constant 0 : i32
    return %c0_i32, %c0_i32_0 : i32, i32
  }
  func.func @transform_3(%arg0: i32) -> (i32, i32) {
    %c0_i32 = arith.constant 0 : i32
    %c0_i32_0 = arith.constant 0 : i32
    return %arg0, %c0_i32 : i32, i32
  }
}

</mosaic_0001>

<llo_original>
// kernel: relation_trans_forward.3
$region0: #{relation_trans_forward.3}
  #allocation0 [shape = 'u32[]', space=smem, size = 0x4, offset = 0x4, fixed_abs, tag = 'smem constant byte address 0x4 - core index']
  #allocation1 [shape = 'u32[144,128]{1,0:T(1,128)}', space=vmem, size = 0x12000, scoped, tag = 'internal scratch']
  %s0 = inlined_call_operand.vmem [shape: bf16[128,192], index: 0, kind: input, shape index: {}]
  %s1 = inlined_call_operand.vmem [shape: bf16[96,96], index: 1, kind: input, shape index: {}]
  %s2 = inlined_call_operand.vmem [shape: f32[1,96], index: 2, kind: input, shape index: {}]
  %s3 = inlined_call_operand.vmem [shape: f32[128,288], index: 3, kind: output, shape index: {}]
  %s4 = sld [smem:[#allocation0]]
  $region45: #{relation_trans_forward.3} parent=0
    _
  %s6 = ssub.s32 1, %s4
  %s7 = scalar_select 0, %s6, %s4
  loop: start=0, step=1, limit=4
  $region2: #{relation_trans_forward.3} parent=0 // loop_pre_header
    _
  $region3: #{relation_trans_forward.3} parent=0 // loop_header
    %s9 = sphi 0, %s13
    %p10 = scmp.ge.s32.totalorder %s9, 4
    %s19 = sphi 0, %s21
    %s22 = sphi 0, %s19
    %s23 = sphi 0, %s22
    %s39 = sphi 0, %s23
    %s43 = sphi 0, %s43
    %s45 = sphi 0, %s43
    %s46 = sphi 0, %s45
    %s60 = sphi 0, %s46
    %s64 = sphi 0, %s64
    %s66 = sphi 0, %s64
    %s67 = sphi 0, %s66
    %s81 = sphi 0, %s67
    %s87 = sphi 0, %s89
    %s90 = sphi 0, %s87
    %s91 = sphi 0, %s90
    %s107 = sphi 0, %s91
  $region4: #{relation_trans_forward.3} parent=0 // loop_header_branch
    %12 = sbr.rel (%p10) target = $region8
  $region5: #{relation_trans_forward.3} parent=0 // loop_body
    %s14 = ssub.s32 %s9, 1
    %s15 = ssub.s32 %s9, 2
    %s16 = sadd.s32 %s9, 1
    %s17 = ssub.s32 %s9, %s16
    %p18 = scmp.eq.s32.totalorder %s17, 0
    %s20 = sadd.s32 %s19, 1
    %s21 = scalar_select %p18, %s19, %s20
    %p24 = pneg %p18
    %p25 = scmp.eq.s32.totalorder %s9, 1
    %p26 = por %p24, %p25
    %p27 = scmp.ne.s32.totalorder %s19, %s22
    %p28 = scmp.eq.s32.totalorder %s9, 0
    %p29 = por %p27, %p28
    %p30 = scmp.ne.s32.totalorder %s19, %s22
    %p31 = scmp.eq.s32.totalorder %s14, 1
    %p32 = por %p30, %p31
    %p33 = scmp.ne.s32.totalorder %s22, %s23
    %p34 = scmp.eq.s32.totalorder %s14, 0
    %p35 = por %p33, %p34
    %p36 = scmp.ne.s32.totalorder %s22, %s23
    %p37 = scmp.eq.s32.totalorder %s15, 1
    %p38 = por %p36, %p37
    %p40 = scmp.ne.s32.totalorder %s23, %s39
    %p41 = scmp.eq.s32.totalorder %s15, 0
    %p42 = por %p40, %p41
    %s44 = sadd.s32 %s43, 1
    %p47 = scmp.eq.s32.totalorder %s9, 1
    %p48 = scmp.ne.s32.totalorder %s43, %s45
    %p49 = scmp.eq.s32.totalorder %s9, 0
    %p50 = por %p48, %p49
    %p51 = scmp.ne.s32.totalorder %s43, %s45
    %p52 = scmp.eq.s32.totalorder %s14, 1
    %p53 = por %p51, %p52
    %p54 = scmp.ne.s32.totalorder %s45, %s46
    %p55 = scmp.eq.s32.totalorder %s14, 0
    %p56 = por %p54, %p55
    %p57 = scmp.ne.s32.totalorder %s45, %s46
    %p58 = scmp.eq.s32.totalorder %s15, 1
    %p59 = por %p57, %p58
    %p61 = scmp.ne.s32.totalorder %s46, %s60
    %p62 = scmp.eq.s32.totalorder %s15, 0
    %p63 = por %p61, %p62
    %s65 = sadd.s32 %s64, 1
    %p68 = scmp.eq.s32.totalorder %s9, 1
    %p69 = scmp.ne.s32.totalorder %s64, %s66
    %p70 = scmp.eq.s32.totalorder %s9, 0
    %p71 = por %p69, %p70
    %p72 = scmp.ne.s32.totalorder %s64, %s66
    %p73 = scmp.eq.s32.totalorder %s14, 1
    %p74 = por %p72, %p73
    %p75 = scmp.ne.s32.totalorder %s66, %s67
    %p76 = scmp.eq.s32.totalorder %s14, 0
    %p77 = por %p75, %p76
    %p78 = scmp.ne.s32.totalorder %s66, %s67
    %p79 = scmp.eq.s32.totalorder %s15, 1
    %p80 = por %p78, %p79
    %p82 = scmp.ne.s32.totalorder %s67, %s81
    %p83 = scmp.eq.s32.totalorder %s15, 0
    %p84 = por %p82, %p83
    %s85 = ssub.s32 %s9, %s16
    %p86 = scmp.eq.s32.totalorder %s85, 0
    %s88 = sadd.s32 %s87, 1
    %s89 = scalar_select %p86, %s87, %s88
    %p92 = pneg %p86
    %p93 = scmp.eq.s32.totalorder %s9, 1
    %p94 = por %p92, %p93
    %p95 = scmp.ne.s32.totalorder %s87, %s90
    %p96 = scmp.eq.s32.totalorder %s9, 0
    %p97 = por %p95, %p96
    %p98 = scmp.ne.s32.totalorder %s87, %s90
    %p99 = scmp.eq.s32.totalorder %s14, 1
    %p100 = por %p98, %p99
    %p101 = scmp.ne.s32.totalorder %s90, %s91
    %p102 = scmp.eq.s32.totalorder %s14, 0
    %p103 = por %p101, %p102
    %p104 = scmp.ne.s32.totalorder %s90, %s91
    %p105 = scmp.eq.s32.totalorder %s15, 1
    %p106 = por %p104, %p105
    %p108 = scmp.ne.s32.totalorder %s91, %s107
    %p109 = scmp.eq.s32.totalorder %s15, 0
    %p110 = por %p108, %p109
    %p111 = scmp.le.s32.totalorder 1, %s9
    %p112 = scmp.lt.s32.totalorder %s9, 3
    %p113 = pnand %p111, %p112
    %p114 = pneg %p113
    // Predicated region
    $region9: #{relation_trans_forward.3} parent=5 // pred_check
      _
    $region10: #{relation_trans_forward.3} parent=5 // pred_check_branch
      %116 = sbr.rel (%p113) target = $region12
    $region11: #{relation_trans_forward.3} parent=5 // pred_region
      %s117 = ssub.s32 %s9, 1
      // Predicated region
      $region13: #{relation_trans_forward.3} parent=11 // pred_check
        %p118 = pneg %p56
      $region14: #{relation_trans_forward.3} parent=11 // pred_check_branch
        %120 = sbr.rel (%p118) target = $region16
      $region15: #{relation_trans_forward.3} parent=11 // pred_region
        _
      $region16: #{relation_trans_forward.3} parent=11 // pred_fallthru
        _
      // Predicated region
      $region17: #{relation_trans_forward.3} parent=11 // pred_check
        %p121 = pneg %p77
      $region18: #{relation_trans_forward.3} parent=11 // pred_check_branch
        %123 = sbr.rel (%p121) target = $region20
      $region19: #{relation_trans_forward.3} parent=11 // pred_region
        _
      $region20: #{relation_trans_forward.3} parent=11 // pred_fallthru
        _
    $region12: #{relation_trans_forward.3} parent=5 // pred_fallthru
      _
    %p124 = scmp.lt.s32.totalorder %s9, 2
    // Predicated region
    $region21: #{relation_trans_forward.3} parent=5 // pred_check
      %p125 = pneg %p124
    $region22: #{relation_trans_forward.3} parent=5 // pred_check_branch
      %127 = sbr.rel (%p125) target = $region24
    $region23: #{relation_trans_forward.3} parent=5 // pred_region
      // Predicated region
      $region25: #{relation_trans_forward.3} parent=23 // pred_check
        %p128 = pneg %p29
      $region26: #{relation_trans_forward.3} parent=23 // pred_check_branch
        %130 = sbr.rel (%p128) target = $region28
      $region27: #{relation_trans_forward.3} parent=23 // pred_region
        %s131 = smul.u32 8, %s9
        %p132 = scmp.lt.s32.totalorder %s131, 15
        %s133 = scalar_select %p132, %s131, 15
        %s134 = smul.addr %s133, 2
        %s135 = smul.addr %s134, 4
        %s136 = scalar_lea.vmem %s0, %s135
        %s137 = smul.u32 8, %s9
      $region28: #{relation_trans_forward.3} parent=23 // pred_fallthru
        _
    $region24: #{relation_trans_forward.3} parent=5 // pred_fallthru
      _
    %p138 = scmp.le.s32.totalorder 1, %s9
    %p139 = scmp.lt.s32.totalorder %s9, 3
    %p140 = pnand %p138, %p139
    %p141 = pneg %p140
    // Predicated region
    $region29: #{relation_trans_forward.3} parent=5 // pred_check
      _
    $region30: #{relation_trans_forward.3} parent=5 // pred_check_branch
      %143 = sbr.rel (%p140) target = $region32
    $region31: #{relation_trans_forward.3} parent=5 // pred_region
      %s144 = ssub.s32 %s9, 1
      %s145 = smul.u32 8, %s14
      %p146 = scmp.lt.s32.totalorder %s145, 15
      %s147 = scalar_select %p146, %s145, 15
      %s148 = smul.addr %s147, 2
      %s149 = smul.addr %s148, 4
      %s150 = scalar_lea.vmem %s0, %s149
      %p151 = pneg %p35
      %p152 = pneg %p32
      %p153 = pneg %p56
      %p154 = pneg %p53
      %p155 = pneg %p77
      %p156 = pneg %p74
      %p157 = pneg %p103
      %p158 = pneg %p100
      %s159 = smul.u32 8, %s14
      %p160 = scmp.lt.s32.totalorder %s159, 15
      %s161 = scalar_select %p160, %s159, 15
      %s162 = smul.addr %s161, 3
      %s163 = smul.addr %s162, 8
      %s164 = scalar_lea.vmem %s3, %s163
      %s165 = smul.u32 8, %s14
      %p166 = scmp.lt.s32.totalorder %s165, 15
      %s167 = scalar_select %p166, %s165, 15
      %s168 = smul.addr %s167, 2
      %s169 = smul.addr %s168, 4
      %s170 = scalar_lea.vmem %s0, %s169
      %s171 = smul.u32 8, %s14
      %s172 = smul.u32 8, %s14
      %p173 = scmp.lt.s32.totalorder %s172, 15
      %s174 = scalar_select %p173, %s172, 15
      %s175 = smul.addr %s174, 3
      %s176 = smul.addr %s175, 8
      %s177 = scalar_lea.vmem %s3, %s176
      %s178 = smul.u32 8, %s14
      %v180 = vld [vmem:[%s170] sm:$0xff]
      %v181 = vld [vmem:[%s170 + $0x8] sm:$0xff]
      %v182 = vld [vmem:[%s170 + $0x10] sm:$0xff]
      %v183 = vld [vmem:[%s170 + $0x18] sm:$0xff]
      %v184 = vld [vmem:[%s170 + $0x20] sm:$0xff]
      %v185 = vld [vmem:[%s170 + $0x28] sm:$0xff]
      %v186 = vld [vmem:[%s170 + $0x30] sm:$0xff]
      %v187 = vld [vmem:[%s170 + $0x38] sm:$0xff]
      %v188 = vunpack.c.l.bf16 %v180
      %v189 = vunpack.c.h.bf16 %v180
      %v190 = vunpack.c.l.bf16 %v181
      %v191 = vunpack.c.h.bf16 %v181
      %v192 = vunpack.c.l.bf16 %v182
      %v193 = vunpack.c.h.bf16 %v182
      %v194 = vunpack.c.l.bf16 %v183
      %v195 = vunpack.c.h.bf16 %v183
      %v196 = vunpack.c.l.bf16 %v184
      %v197 = vunpack.c.h.bf16 %v184
      %v198 = vunpack.c.l.bf16 %v185
      %v199 = vunpack.c.h.bf16 %v185
      %v200 = vunpack.c.l.bf16 %v186
      %v201 = vunpack.c.h.bf16 %v186
      %v202 = vunpack.c.l.bf16 %v187
      %v203 = vunpack.c.h.bf16 %v187
      %v204 = vld [vmem:[%s1] sm:$0xf]
      %v205 = vld [vmem:[%s1 + $0x4] sm:$0xf]
      %v206 = vld [vmem:[%s1 + $0x8] sm:$0xf]
      %v207 = vld [vmem:[%s1 + $0xc] sm:$0xf]
      %v208 = vld [vmem:[%s1 + $0x10] sm:$0xf]
      %v209 = vld [vmem:[%s1 + $0x14] sm:$0xf]
      %v210 = vld [vmem:[%s1 + $0x18] sm:$0xf]
      %v211 = vld [vmem:[%s1 + $0x1c] sm:$0xf]
      %v212 = vld [vmem:[%s1 + $0x20] sm:$0xf]
      %v213 = vld [vmem:[%s1 + $0x24] sm:$0xf]
      %v214 = vld [vmem:[%s1 + $0x28] sm:$0xf]
      %v215 = vld [vmem:[%s1 + $0x2c] sm:$0xf]
      %v216 = vld [vmem:[%s2] sm:$0x1]
      %225 = vrot.lane.b32.xlu0 %v188, 96
      %v226 = vpop.permute.xlu0 %225
      %227 = vrot.lane.b32.xlu0 %v190, 96
      %v228 = vpop.permute.xlu0 %227
      %229 = vrot.lane.b32.xlu0 %v192, 96
      %v230 = vpop.permute.xlu0 %229
      %231 = vrot.lane.b32.xlu0 %v194, 96
      %v232 = vpop.permute.xlu0 %231
      %233 = vrot.lane.b32.xlu0 %v196, 96
      %v234 = vpop.permute.xlu0 %233
      %235 = vrot.lane.b32.xlu0 %v198, 96
      %v236 = vpop.permute.xlu0 %235
      %237 = vrot.lane.b32.xlu0 %v200, 96
      %v238 = vpop.permute.xlu0 %237
      %239 = vrot.lane.b32.xlu0 %v202, 96
      %v240 = vpop.permute.xlu0 %239
      %249 = vrot.lane.b32.xlu0 %v188, 64
      %v250 = vpop.permute.xlu0 %249
      %251 = vrot.lane.b32.xlu0 %v190, 64
      %v252 = vpop.permute.xlu0 %251
      %253 = vrot.lane.b32.xlu0 %v192, 64
      %v254 = vpop.permute.xlu0 %253
      %255 = vrot.lane.b32.xlu0 %v194, 64
      %v256 = vpop.permute.xlu0 %255
      %257 = vrot.lane.b32.xlu0 %v196, 64
      %v258 = vpop.permute.xlu0 %257
      %259 = vrot.lane.b32.xlu0 %v198, 64
      %v260 = vpop.permute.xlu0 %259
      %261 = vrot.lane.b32.xlu0 %v200, 64
      %v262 = vpop.permute.xlu0 %261
      %263 = vrot.lane.b32.xlu0 %v202, 64
      %v264 = vpop.permute.xlu0 %263
      %281 = vrot.lane.b32.xlu0 %v189, 32
      %v282 = vpop.permute.xlu0 %281
      %283 = vrot.lane.b32.xlu0 %v191, 32
      %v284 = vpop.permute.xlu0 %283
      %285 = vrot.lane.b32.xlu0 %v193, 32
      %v286 = vpop.permute.xlu0 %285
      %287 = vrot.lane.b32.xlu0 %v195, 32
      %v288 = vpop.permute.xlu0 %287
      %289 = vrot.lane.b32.xlu0 %v197, 32
      %v290 = vpop.permute.xlu0 %289
      %291 = vrot.lane.b32.xlu0 %v199, 32
      %v292 = vpop.permute.xlu0 %291
      %293 = vrot.lane.b32.xlu0 %v201, 32
      %v294 = vpop.permute.xlu0 %293
      %295 = vrot.lane.b32.xlu0 %v203, 32
      %v296 = vpop.permute.xlu0 %295
      %vm305 = vcmask 261120
      %v306 = vsel %vm305, %v226, %v250
      %v307 = vsel %vm305, %v228, %v252
      %v308 = vsel %vm305, %v230, %v254
      %v309 = vsel %vm305, %v232, %v256
      %v310 = vsel %vm305, %v234, %v258
      %v311 = vsel %vm305, %v236, %v260
      %v312 = vsel %vm305, %v238, %v262
      %v313 = vsel %vm305, %v240, %v264
      %vm314 = vcmask 523264
      %v315 = vsel %vm314, %v306, %v282
      %v316 = vsel %vm314, %v307, %v284
      %v317 = vsel %vm314, %v308, %v286
      %v318 = vsel %vm314, %v309, %v288
      %v319 = vsel %vm314, %v310, %v290
      %v320 = vsel %vm314, %v311, %v292
      %v321 = vsel %vm314, %v312, %v294
      %v322 = vsel %vm314, %v313, %v296
      %323 = vrot.lane.b32.xlu0 %v188, 32
      %v324 = vpop.permute.xlu0 %323
      %325 = vrot.lane.b32.xlu0 %v190, 32
      %v326 = vpop.permute.xlu0 %325
      %327 = vrot.lane.b32.xlu0 %v192, 32
      %v328 = vpop.permute.xlu0 %327
      %329 = vrot.lane.b32.xlu0 %v194, 32
      %v330 = vpop.permute.xlu0 %329
      %331 = vrot.lane.b32.xlu0 %v196, 32
      %v332 = vpop.permute.xlu0 %331
      %333 = vrot.lane.b32.xlu0 %v198, 32
      %v334 = vpop.permute.xlu0 %333
      %335 = vrot.lane.b32.xlu0 %v200, 32
      %v336 = vpop.permute.xlu0 %335
      %337 = vrot.lane.b32.xlu0 %v202, 32
      %v338 = vpop.permute.xlu0 %337
      %v347 = vsel %vm305, %v188, %v324
      %v348 = vsel %vm305, %v190, %v326
      %v349 = vsel %vm305, %v192, %v328
      %v350 = vsel %vm305, %v194, %v330
      %v351 = vsel %vm305, %v196, %v332
      %v352 = vsel %vm305, %v198, %v334
      %v353 = vsel %vm305, %v200, %v336
      %v354 = vsel %vm305, %v202, %v338
      %v355 = vsel %vm314, %v347, %v250
      %v356 = vsel %vm314, %v348, %v252
      %v357 = vsel %vm314, %v349, %v254
      %v358 = vsel %vm314, %v350, %v256
      %v359 = vsel %vm314, %v351, %v258
      %v360 = vsel %vm314, %v352, %v260
      %v361 = vsel %vm314, %v353, %v262
      %v362 = vsel %vm314, %v354, %v264
      %v363 = vadd.f32 %v355, %v315
      %v364 = vadd.f32 %v356, %v316
      %v365 = vadd.f32 %v357, %v317
      %v366 = vadd.f32 %v358, %v318
      %v367 = vadd.f32 %v359, %v319
      %v368 = vadd.f32 %v360, %v320
      %v369 = vadd.f32 %v361, %v321
      %v370 = vadd.f32 %v362, %v322
      %v371 = vmax.f32 %v363, 0.0
      %v372 = vmax.f32 %v364, 0.0
      %v373 = vmax.f32 %v365, 0.0
      %v374 = vmax.f32 %v366, 0.0
      %v375 = vmax.f32 %v367, 0.0
      %v376 = vmax.f32 %v368, 0.0
      %v377 = vmax.f32 %v369, 0.0
      %v378 = vmax.f32 %v370, 0.0
      %v379 = vpack.c.bf16 %v372, %v371
      %v380 = vpack.c.bf16 %v374, %v373
      %v381 = vpack.c.bf16 %v376, %v375
      %v382 = vpack.c.bf16 %v378, %v377
      %v384 = vlaneseq
      %v385 = vshrl.u32 %v384, 7
      %v386 = vsub.s32 0, %v385
      %v387 = vrot.slane %v216, %v386
      %v401 = vunpack.c.l.b16 %v204
      %v402 = vunpack.c.l.b16 %v205
      %v403 = vunpack.c.l.b16 %v206
      %v404 = vunpack.c.l.b16 %v207
      %v405 = vunpack.c.l.b16 %v208
      %v406 = vunpack.c.l.b16 %v209
      %v407 = vunpack.c.l.b16 %v210
      %v408 = vunpack.c.l.b16 %v211
      %v409 = vunpack.c.l.b16 %v212
      %v410 = vunpack.c.l.b16 %v213
      %v411 = vunpack.c.l.b16 %v214
      %v412 = vunpack.c.l.b16 %v215
      %v413 = vpack.c.b16 %v402, %v401
      %v414 = vpack.c.b16 %v404, %v403
      %v415 = vpack.c.b16 %v406, %v405
      %v416 = vpack.c.b16 %v408, %v407
      %v417 = vpack.c.b16 %v410, %v409
      %v418 = vpack.c.b16 %v412, %v411
      %vm425 = vcmask 785408
      %v427 = vsel %vm425, %v379, 0
      %v430 = vsel %vm425, %v380, 0
      %v433 = vsel %vm425, %v381, 0
      %v436 = vsel %vm425, %v382, 0
      %438 = vmatprep.subr.bf16.mxu0 0
      %439 = vmatpush1.bf16.msra.mxu0 %v413
      %440 = vmatprep.subr.bf16.mxu0 0
      %441 = vmatpush1.bf16.msra.mxu0 %v414
      %442 = vmatprep.subr.bf16.mxu0 0
      %443 = vmatpush1.bf16.msra.mxu0 %v415
      %444 = vmatprep.subr.bf16.mxu0 0
      %445 = vmatpush1.bf16.msra.mxu0 %v416
      %446 = vmatprep.subr.bf16.mxu0 0
      %447 = vmatpush1.bf16.msra.mxu0 %v417
      %448 = vmatprep.subr.bf16.mxu0 0
      %449 = vmatpush1.bf16.msra.mxu0 %v418
      %450 = vmatprep.subr.bf16.mxu0 0
      %451 = vmatpush1.bf16.msra.mxu0 0
      %452 = vmatprep.subr.bf16.mxu0 0
      %453 = vmatpush1.bf16.msra.mxu0 0
      %454 = vmatprep.subr.bf16.mxu0 0
      %455 = vmatpush1.bf16.msra.mxu0 0
      %456 = vmatprep.subr.bf16.mxu0 0
      %457 = vmatpush1.bf16.msra.mxu0 0
      %458 = vmatprep.subr.bf16.mxu0 0
      %459 = vmatpush1.bf16.msra.mxu0 0
      %460 = vmatprep.subr.bf16.mxu0 0
      %461 = vmatpush1.bf16.msra.mxu0 0
      %462 = vmatprep.subr.bf16.mxu0 0
      %463 = vmatpush1.bf16.msra.mxu0 0
      %464 = vmatprep.subr.bf16.mxu0 0
      %465 = vmatpush1.bf16.msra.mxu0 0
      %466 = vmatprep.subr.bf16.mxu0 0
      %467 = vmatpush1.bf16.msra.mxu0 0
      %468 = vmatprep.subr.bf16.mxu0 0
      %469 = vmatpush1.bf16.msra.mxu0 0
      %470 = vmatprep.mubr.bf16.mxu0 0
      %471 = vmatmul.mubr.bf16.gmra.mrb[0].mxu0 %v427
      %v472 = vpop.f32.mrb[0].mxu0
      %v473 = vadd.f32 %v387, %v472
      %v474 = vpop.f32.mrb[0].mxu0
      %v475 = vpop.f32.mrb[0].mxu0
      %v476 = vadd.f32 %v387, %v475
      %v477 = vpop.f32.mrb[0].mxu0
      %478 = vmatprep.mubr.bf16.mxu0 0
      %479 = vmatmul.mubr.bf16.gmra.mrb[0].mxu0 %v430
      %v480 = vpop.f32.mrb[0].mxu0
      %v481 = vadd.f32 %v387, %v480
      %v482 = vpop.f32.mrb[0].mxu0
      %v483 = vpop.f32.mrb[0].mxu0
      %v484 = vadd.f32 %v387, %v483
      %v485 = vpop.f32.mrb[0].mxu0
      %486 = vmatprep.mubr.bf16.mxu0 0
      %487 = vmatmul.mubr.bf16.gmra.mrb[0].mxu0 %v433
      %v488 = vpop.f32.mrb[0].mxu0
      %v489 = vadd.f32 %v387, %v488
      %v490 = vpop.f32.mrb[0].mxu0
      %v491 = vpop.f32.mrb[0].mxu0
      %v492 = vadd.f32 %v387, %v491
      %v493 = vpop.f32.mrb[0].mxu0
      %494 = vmatprep.mubr.bf16.mxu0 0
      %495 = vmatmul.mubr.bf16.gmra.mrb[0].mxu0 %v436
      %v496 = vpop.f32.mrb[0].mxu0
      %v497 = vadd.f32 %v387, %v496
      %v498 = vpop.f32.mrb[0].mxu0
      %v499 = vpop.f32.mrb[0].mxu0
      %v500 = vadd.f32 %v387, %v499
      %v501 = vpop.f32.mrb[0].mxu0
      %502 = vdwg.mxu0
      %v503 = vsel %vm305, %v250, %v226
      %v504 = vsel %vm305, %v252, %v228
      %v505 = vsel %vm305, %v254, %v230
      %v506 = vsel %vm305, %v256, %v232
      %v507 = vsel %vm305, %v258, %v234
      %v508 = vsel %vm305, %v260, %v236
      %v509 = vsel %vm305, %v262, %v238
      %v510 = vsel %vm305, %v264, %v240
      %v511 = vsel %vm314, %v503, %v188
      %v512 = vsel %vm314, %v504, %v190
      %v513 = vsel %vm314, %v505, %v192
      %v514 = vsel %vm314, %v506, %v194
      %v515 = vsel %vm314, %v507, %v196
      %v516 = vsel %vm314, %v508, %v198
      %v517 = vsel %vm314, %v509, %v200
      %v518 = vsel %vm314, %v510, %v202
      %v519 = vadd.f32 %v511, %v315
      %v520 = vadd.f32 %v512, %v316
      %v521 = vadd.f32 %v513, %v317
      %v522 = vadd.f32 %v514, %v318
      %v523 = vadd.f32 %v515, %v319
      %v524 = vadd.f32 %v516, %v320
      %v525 = vadd.f32 %v517, %v321
      %v526 = vadd.f32 %v518, %v322
      %v527 = vmax.f32 %v519, 0.0
      %v528 = vmax.f32 %v520, 0.0
      %v529 = vmax.f32 %v521, 0.0
      %v530 = vmax.f32 %v522, 0.0
      %v531 = vmax.f32 %v523, 0.0
      %v532 = vmax.f32 %v524, 0.0
      %v533 = vmax.f32 %v525, 0.0
      %v534 = vmax.f32 %v526, 0.0
      %v535 = vpack.c.bf16 %v528, %v527
      %v536 = vpack.c.bf16 %v530, %v529
      %v537 = vpack.c.bf16 %v532, %v531
      %v538 = vpack.c.bf16 %v534, %v533
      %v540 = vsel %vm425, %v535, 0
      %v543 = vsel %vm425, %v536, 0
      %v546 = vsel %vm425, %v537, 0
      %v549 = vsel %vm425, %v538, 0
      %551 = vmatprep.subr.bf16.mxu0 0
      %552 = vmatpush1.bf16.msra.mxu0 %v413
      %553 = vmatprep.subr.bf16.mxu0 0
      %554 = vmatpush1.bf16.msra.mxu0 %v414
      %555 = vmatprep.subr.bf16.mxu0 0
      %556 = vmatpush1.bf16.msra.mxu0 %v415
      %557 = vmatprep.subr.bf16.mxu0 0
      %558 = vmatpush1.bf16.msra.mxu0 %v416
      %559 = vmatprep.subr.bf16.mxu0 0
      %560 = vmatpush1.bf16.msra.mxu0 %v417
      %561 = vmatprep.subr.bf16.mxu0 0
      %562 = vmatpush1.bf16.msra.mxu0 %v418
      %563 = vmatprep.subr.bf16.mxu0 0
      %564 = vmatpush1.bf16.msra.mxu0 0
      %565 = vmatprep.subr.bf16.mxu0 0
      %566 = vmatpush1.bf16.msra.mxu0 0
      %567 = vmatprep.subr.bf16.mxu0 0
      %568 = vmatpush1.bf16.msra.mxu0 0
      %569 = vmatprep.subr.bf16.mxu0 0
      %570 = vmatpush1.bf16.msra.mxu0 0
      %571 = vmatprep.subr.bf16.mxu0 0
      %572 = vmatpush1.bf16.msra.mxu0 0
      %573 = vmatprep.subr.bf16.mxu0 0
      %574 = vmatpush1.bf16.msra.mxu0 0
      %575 = vmatprep.subr.bf16.mxu0 0
      %576 = vmatpush1.bf16.msra.mxu0 0
      %577 = vmatprep.subr.bf16.mxu0 0
      %578 = vmatpush1.bf16.msra.mxu0 0
      %579 = vmatprep.subr.bf16.mxu0 0
      %580 = vmatpush1.bf16.msra.mxu0 0
      %581 = vmatprep.subr.bf16.mxu0 0
      %582 = vmatpush1.bf16.msra.mxu0 0
      %583 = vmatprep.mubr.bf16.mxu0 0
      %584 = vmatmul.mubr.bf16.gmra.mrb[0].mxu0 %v540
      %v585 = vpop.f32.mrb[0].mxu0
      %v586 = vadd.f32 %v387, %v585
      %v587 = vpop.f32.mrb[0].mxu0
      %v588 = vpop.f32.mrb[0].mxu0
      %v589 = vadd.f32 %v387, %v588
      %v590 = vpop.f32.mrb[0].mxu0
      %591 = vmatprep.mubr.bf16.mxu0 0
      %592 = vmatmul.mubr.bf16.gmra.mrb[0].mxu0 %v543
      %v593 = vpop.f32.mrb[0].mxu0
      %v594 = vadd.f32 %v387, %v593
      %v595 = vpop.f32.mrb[0].mxu0
      %v596 = vpop.f32.mrb[0].mxu0
      %v597 = vadd.f32 %v387, %v596
      %v598 = vpop.f32.mrb[0].mxu0
      %599 = vmatprep.mubr.bf16.mxu0 0
      %600 = vmatmul.mubr.bf16.gmra.mrb[0].mxu0 %v546
      %v601 = vpop.f32.mrb[0].mxu0
      %v602 = vadd.f32 %v387, %v601
      %v603 = vpop.f32.mrb[0].mxu0
      %v604 = vpop.f32.mrb[0].mxu0
      %v605 = vadd.f32 %v387, %v604
      %v606 = vpop.f32.mrb[0].mxu0
      %607 = vmatprep.mubr.bf16.mxu0 0
      %608 = vmatmul.mubr.bf16.gmra.mrb[0].mxu0 %v549
      %v609 = vpop.f32.mrb[0].mxu0
      %v610 = vadd.f32 %v387, %v609
      %v611 = vpop.f32.mrb[0].mxu0
      %v612 = vpop.f32.mrb[0].mxu0
      %v613 = vadd.f32 %v387, %v612
      %v614 = vpop.f32.mrb[0].mxu0
      %615 = vdwg.mxu0
      %616 = vrot.lane.b32.xlu0 %v189, 64
      %v617 = vpop.permute.xlu0 %616
      %618 = vrot.lane.b32.xlu0 %v191, 64
      %v619 = vpop.permute.xlu0 %618
      %620 = vrot.lane.b32.xlu0 %v193, 64
      %v621 = vpop.permute.xlu0 %620
      %622 = vrot.lane.b32.xlu0 %v195, 64
      %v623 = vpop.permute.xlu0 %622
      %624 = vrot.lane.b32.xlu0 %v197, 64
      %v625 = vpop.permute.xlu0 %624
      %626 = vrot.lane.b32.xlu0 %v199, 64
      %v627 = vpop.permute.xlu0 %626
      %628 = vrot.lane.b32.xlu0 %v201, 64
      %v629 = vpop.permute.xlu0 %628
      %630 = vrot.lane.b32.xlu0 %v203, 64
      %v631 = vpop.permute.xlu0 %630
      %v640 = vsel %vm305, %v189, %v282
      %v641 = vsel %vm305, %v191, %v284
      %v642 = vsel %vm305, %v193, %v286
      %v643 = vsel %vm305, %v195, %v288
      %v644 = vsel %vm305, %v197, %v290
      %v645 = vsel %vm305, %v199, %v292
      %v646 = vsel %vm305, %v201, %v294
      %v647 = vsel %vm305, %v203, %v296
      %v648 = vsel %vm314, %v640, %v617
      %v649 = vsel %vm314, %v641, %v619
      %v650 = vsel %vm314, %v642, %v621
      %v651 = vsel %vm314, %v643, %v623
      %v652 = vsel %vm314, %v644, %v625
      %v653 = vsel %vm314, %v645, %v627
      %v654 = vsel %vm314, %v646, %v629
      %v655 = vsel %vm314, %v647, %v631
      %v656 = vadd.f32 %v648, %v315
      %v657 = vadd.f32 %v649, %v316
      %v658 = vadd.f32 %v650, %v317
      %v659 = vadd.f32 %v651, %v318
      %v660 = vadd.f32 %v652, %v319
      %v661 = vadd.f32 %v653, %v320
      %v662 = vadd.f32 %v654, %v321
      %v663 = vadd.f32 %v655, %v322
      %v664 = vmax.f32 %v656, 0.0
      %v665 = vmax.f32 %v657, 0.0
      %v666 = vmax.f32 %v658, 0.0
      %v667 = vmax.f32 %v659, 0.0
      %v668 = vmax.f32 %v660, 0.0
      %v669 = vmax.f32 %v661, 0.0
      %v670 = vmax.f32 %v662, 0.0
      %v671 = vmax.f32 %v663, 0.0
      %v672 = vpack.c.bf16 %v665, %v664
      %v673 = vpack.c.bf16 %v667, %v666
      %v674 = vpack.c.bf16 %v669, %v668
      %v675 = vpack.c.bf16 %v671, %v670
      %v677 = vsel %vm425, %v672, 0
      %v680 = vsel %vm425, %v673, 0
      %v683 = vsel %vm425, %v674, 0
      %v686 = vsel %vm425, %v675, 0
      %688 = vmatprep.subr.bf16.mxu0 0
      %689 = vmatpush1.bf16.msra.mxu0 %v413
      %690 = vmatprep.subr.bf16.mxu0 0
      %691 = vmatpush1.bf16.msra.mxu0 %v414
      %692 = vmatprep.subr.bf16.mxu0 0
      %693 = vmatpush1.bf16.msra.mxu0 %v415
      %694 = vmatprep.subr.bf16.mxu0 0
      %695 = vmatpush1.bf16.msra.mxu0 %v416
      %696 = vmatprep.subr.bf16.mxu0 0
      %697 = vmatpush1.bf16.msra.mxu0 %v417
      %698 = vmatprep.subr.bf16.mxu0 0
      %699 = vmatpush1.bf16.msra.mxu0 %v418
      %700 = vmatprep.subr.bf16.mxu0 0
      %701 = vmatpush1.bf16.msra.mxu0 0
      %702 = vmatprep.subr.bf16.mxu0 0
      %703 = vmatpush1.bf16.msra.mxu0 0
      %704 = vmatprep.subr.bf16.mxu0 0
      %705 = vmatpush1.bf16.msra.mxu0 0
      %706 = vmatprep.subr.bf16.mxu0 0
      %707 = vmatpush1.bf16.msra.mxu0 0
      %708 = vmatprep.subr.bf16.mxu0 0
      %709 = vmatpush1.bf16.msra.mxu0 0
      %710 = vmatprep.subr.bf16.mxu0 0
      %711 = vmatpush1.bf16.msra.mxu0 0
      %712 = vmatprep.subr.bf16.mxu0 0
      %713 = vmatpush1.bf16.msra.mxu0 0
      %714 = vmatprep.subr.bf16.mxu0 0
      %715 = vmatpush1.bf16.msra.mxu0 0
      %716 = vmatprep.subr.bf16.mxu0 0
      %717 = vmatpush1.bf16.msra.mxu0 0
      %718 = vmatprep.subr.bf16.mxu0 0
      %719 = vmatpush1.bf16.msra.mxu0 0
      %720 = vmatprep.mubr.bf16.mxu0 0
      %721 = vmatmul.mubr.bf16.gmra.mrb[0].mxu0 %v677
      %v722 = vpop.f32.mrb[0].mxu0
      %v723 = vadd.f32 %v387, %v722
      %v724 = vpop.f32.mrb[0].mxu0
      %v725 = vpop.f32.mrb[0].mxu0
      %v726 = vadd.f32 %v387, %v725
      %v727 = vpop.f32.mrb[0].mxu0
      %728 = vmatprep.mubr.bf16.mxu0 0
      %729 = vmatmul.mubr.bf16.gmra.mrb[0].mxu0 %v680
      %v730 = vpop.f32.mrb[0].mxu0
      %v731 = vadd.f32 %v387, %v730
      %v732 = vpop.f32.mrb[0].mxu0
      %v733 = vpop.f32.mrb[0].mxu0
      %v734 = vadd.f32 %v387, %v733
      %v735 = vpop.f32.mrb[0].mxu0
      %736 = vmatprep.mubr.bf16.mxu0 0
      %737 = vmatmul.mubr.bf16.gmra.mrb[0].mxu0 %v683
      %v738 = vpop.f32.mrb[0].mxu0
      %v739 = vadd.f32 %v387, %v738
      %v740 = vpop.f32.mrb[0].mxu0
      %v741 = vpop.f32.mrb[0].mxu0
      %v742 = vadd.f32 %v387, %v741
      %v743 = vpop.f32.mrb[0].mxu0
      %744 = vmatprep.mubr.bf16.mxu0 0
      %745 = vmatmul.mubr.bf16.gmra.mrb[0].mxu0 %v686
      %v746 = vpop.f32.mrb[0].mxu0
      %v747 = vadd.f32 %v387, %v746
      %v748 = vpop.f32.mrb[0].mxu0
      %v749 = vpop.f32.mrb[0].mxu0
      %v750 = vadd.f32 %v387, %v749
      %v751 = vpop.f32.mrb[0].mxu0
      %752 = vdwg.mxu0
      %761 = vrot.lane.b32.xlu0 %v586, 96
      %v762 = vpop.permute.xlu0 %761
      %763 = vrot.lane.b32.xlu0 %v589, 96
      %v764 = vpop.permute.xlu0 %763
      %765 = vrot.lane.b32.xlu0 %v594, 96
      %v766 = vpop.permute.xlu0 %765
      %767 = vrot.lane.b32.xlu0 %v597, 96
      %v768 = vpop.permute.xlu0 %767
      %769 = vrot.lane.b32.xlu0 %v602, 96
      %v770 = vpop.permute.xlu0 %769
      %771 = vrot.lane.b32.xlu0 %v605, 96
      %v772 = vpop.permute.xlu0 %771
      %773 = vrot.lane.b32.xlu0 %v610, 96
      %v774 = vpop.permute.xlu0 %773
      %775 = vrot.lane.b32.xlu0 %v613, 96
      %v776 = vpop.permute.xlu0 %775
      %793 = vrot.lane.b32.xlu0 %v723, 64
      %v794 = vpop.permute.xlu0 %793
      %795 = vrot.lane.b32.xlu0 %v726, 64
      %v796 = vpop.permute.xlu0 %795
      %797 = vrot.lane.b32.xlu0 %v731, 64
      %v798 = vpop.permute.xlu0 %797
      %799 = vrot.lane.b32.xlu0 %v734, 64
      %v800 = vpop.permute.xlu0 %799
      %801 = vrot.lane.b32.xlu0 %v739, 64
      %v802 = vpop.permute.xlu0 %801
      %803 = vrot.lane.b32.xlu0 %v742, 64
      %v804 = vpop.permute.xlu0 %803
      %805 = vrot.lane.b32.xlu0 %v747, 64
      %v806 = vpop.permute.xlu0 %805
      %807 = vrot.lane.b32.xlu0 %v750, 64
      %v808 = vpop.permute.xlu0 %807
      %v817 = vsel %vm425, %v473, %v762
      %v818 = vsel %vm425, %v476, %v764
      %v819 = vsel %vm425, %v481, %v766
      %v820 = vsel %vm425, %v484, %v768
      %v821 = vsel %vm425, %v489, %v770
      %v822 = vsel %vm425, %v492, %v772
      %v823 = vsel %vm425, %v497, %v774
      %v824 = vsel %vm425, %v500, %v776
      %v825 = vsel %vm314, %v762, %v794
      %v826 = vsel %vm314, %v764, %v796
      %v827 = vsel %vm314, %v766, %v798
      %v828 = vsel %vm314, %v768, %v800
      %v829 = vsel %vm314, %v770, %v802
      %v830 = vsel %vm314, %v772, %v804
      %v831 = vsel %vm314, %v774, %v806
      %v832 = vsel %vm314, %v776, %v808
      %833 = vst [vmem:[%s177] sm:$0xff] %v817
      %834 = vst [vmem:[%s177 + $0x8] sm:$0xff] %v825
      %835 = vst.msk [vmem:[%s177 + $0x10] sm:$0xff] %vm305, %v794
      %836 = vst [vmem:[%s177 + $0x18] sm:$0xff] %v818
      %837 = vst [vmem:[%s177 + $0x20] sm:$0xff] %v826
      %838 = vst.msk [vmem:[%s177 + $0x28] sm:$0xff] %vm305, %v796
      %839 = vst [vmem:[%s177 + $0x30] sm:$0xff] %v819
      %840 = vst [vmem:[%s177 + $0x38] sm:$0xff] %v827
      %841 = vst.msk [vmem:[%s177 + $0x40] sm:$0xff] %vm305, %v798
      %842 = vst [vmem:[%s177 + $0x48] sm:$0xff] %v820
      %843 = vst [vmem:[%s177 + $0x50] sm:$0xff] %v828
      %844 = vst.msk [vmem:[%s177 + $0x58] sm:$0xff] %vm305, %v800
      %845 = vst [vmem:[%s177 + $0x60] sm:$0xff] %v821
      %846 = vst [vmem:[%s177 + $0x68] sm:$0xff] %v829
      %847 = vst.msk [vmem:[%s177 + $0x70] sm:$0xff] %vm305, %v802
      %848 = vst [vmem:[%s177 + $0x78] sm:$0xff] %v822
      %849 = vst [vmem:[%s177 + $0x80] sm:$0xff] %v830
      %850 = vst.msk [vmem:[%s177 + $0x88] sm:$0xff] %vm305, %v804
      %851 = vst [vmem:[%s177 + $0x90] sm:$0xff] %v823
      %852 = vst [vmem:[%s177 + $0x98] sm:$0xff] %v831
      %853 = vst.msk [vmem:[%s177 + $0xa0] sm:$0xff] %vm305, %v806
      %854 = vst [vmem:[%s177 + $0xa8] sm:$0xff] %v824
      %855 = vst [vmem:[%s177 + $0xb0] sm:$0xff] %v832
      %856 = vst.msk [vmem:[%s177 + $0xb8] sm:$0xff] %vm305, %v808
      %s857 = smul.u32 8, %s14
      %p858 = scmp.lt.s32.totalorder %s857, 15
      %s859 = scalar_select %p858, %s857, 15
      %s860 = smul.addr %s859, 3
      %s861 = smul.addr %s860, 8
      %s862 = scalar_lea.vmem %s3, %s861
      // Predicated region
      $region33: #{relation_trans_forward.3} parent=31 // pred_check
        %p863 = pneg %p100
      $region34: #{relation_trans_forward.3} parent=31 // pred_check_branch
        %865 = sbr.rel (%p863) target = $region36
      $region35: #{relation_trans_forward.3} parent=31 // pred_region
        %s866 = smul.u32 8, %s14
      $region36: #{relation_trans_forward.3} parent=31 // pred_fallthru
        _
    $region32: #{relation_trans_forward.3} parent=5 // pred_fallthru
      _
    %p867 = scmp.le.s32.totalorder 2, %s9
    // Predicated region
    $region37: #{relation_trans_forward.3} parent=5 // pred_check
      %p868 = pneg %p867
    $region38: #{relation_trans_forward.3} parent=5 // pred_check_branch
      %870 = sbr.rel (%p868) target = $region40
    $region39: #{relation_trans_forward.3} parent=5 // pred_region
      %s871 = ssub.s32 %s9, 2
      // Predicated region
      $region41: #{relation_trans_forward.3} parent=39 // pred_check
        %p872 = pneg %p106
      $region42: #{relation_trans_forward.3} parent=39 // pred_check_branch
        %874 = sbr.rel (%p872) target = $region44
      $region43: #{relation_trans_forward.3} parent=39 // pred_region
        %s875 = smul.u32 8, %s15
        %p876 = scmp.lt.s32.totalorder %s875, 15
        %s877 = scalar_select %p876, %s875, 15
        %s878 = smul.addr %s877, 3
        %s879 = smul.addr %s878, 8
        %s880 = scalar_lea.vmem %s3, %s879
      $region44: #{relation_trans_forward.3} parent=39 // pred_fallthru
        _
    $region40: #{relation_trans_forward.3} parent=5 // pred_fallthru
      _
  $region6: #{relation_trans_forward.3} parent=0 // loop_footer
    %s13 = sadd.s32 1, %s9
  $region7: #{relation_trans_forward.3} parent=0 // loop_footer_branch
    %8 = sbr.rel target = $region3
  $region8: #{relation_trans_forward.3} parent=0 // loop_exit
    _

// kernel: relation_trans_forward.2
$region0: #{relation_trans_forward.2}
  #allocation0 [shape = 'u32[]', space=smem, size = 0x4, offset = 0x4, fixed_abs, tag = 'smem constant byte address 0x4 - core index']
  #allocation1 [shape = 'u32[144,128]{1,0:T(1,128)}', space=vmem, size = 0x12000, scoped, tag = 'internal scratch']
  %s0 = inlined_call_operand.vmem [shape: bf16[384,128], index: 0, kind: input, shape index: {}]
  %s1 = inlined_call_operand.vmem [shape: bf16[128,32], index: 1, kind: input, shape index: {}]
  %s2 = inlined_call_operand.vmem [shape: bf16[32,32], index: 2, kind: input, shape index: {}]
  %s3 = inlined_call_operand.vmem [shape: bf16[32,64], index: 3, kind: input, shape index: {}]
  %s4 = inlined_call_operand.vmem [shape: f32[2,32], index: 4, kind: input, shape index: {}]
  %s5 = inlined_call_operand.vmem [shape: f32[1,64], index: 5, kind: input, shape index: {}]
  %s6 = inlined_call_operand.vmem [shape: f32[384,32], index: 6, kind: output, shape index: {0}]
  %s7 = inlined_call_operand.vmem [shape: bf16[384,64], index: 7, kind: output, shape index: {1}]
  %8 = xla_tuple %s6, %s7
  %s9 = sld [smem:[#allocation0]]
  $region65: #{relation_trans_forward.2} parent=0
    _
  %s11 = ssub.s32 1, %s9
  %s12 = scalar_select 0, %s11, %s9
  loop: start=0, step=1, limit=4
  $region2: #{relation_trans_forward.2} parent=0 // loop_pre_header
    _
  $region3: #{relation_trans_forward.2} parent=0 // loop_header
    %s14 = sphi 0, %s18
    %p15 = scmp.ge.s32.totalorder %s14, 4
    %s24 = sphi 0, %s26
    %s27 = sphi 0, %s24
    %s28 = sphi 0, %s27
    %s44 = sphi 0, %s28
    %s48 = sphi 0, %s48
    %s50 = sphi 0, %s48
    %s51 = sphi 0, %s50
    %s65 = sphi 0, %s51
    %s69 = sphi 0, %s69
    %s71 = sphi 0, %s69
    %s72 = sphi 0, %s71
    %s86 = sphi 0, %s72
    %s90 = sphi 0, %s90
    %s92 = sphi 0, %s90
    %s93 = sphi 0, %s92
    %s107 = sphi 0, %s93
    %s111 = sphi 0, %s111
    %s113 = sphi 0, %s111
    %s114 = sphi 0, %s113
    %s128 = sphi 0, %s114
    %s132 = sphi 0, %s132
    %s134 = sphi 0, %s132
    %s135 = sphi 0, %s134
    %s149 = sphi 0, %s135
    %s155 = sphi 0, %s157
    %s158 = sphi 0, %s155
    %s159 = sphi 0, %s158
    %s175 = sphi 0, %s159
    %s181 = sphi 0, %s183
    %s184 = sphi 0, %s181
    %s185 = sphi 0, %s184
    %s201 = sphi 0, %s185
  $region4: #{relation_trans_forward.2} parent=0 // loop_header_branch
    %17 = sbr.rel (%p15) target = $region8
  $region5: #{relation_trans_forward.2} parent=0 // loop_body
    %s19 = ssub.s32 %s14, 1
    %s20 = ssub.s32 %s14, 2
    %s21 = sadd.s32 %s14, 1
    %s22 = ssub.s32 %s14, %s21
    %p23 = scmp.eq.s32.totalorder %s22, 0
    %s25 = sadd.s32 %s24, 1
    %s26 = scalar_select %p23, %s24, %s25
    %p29 = pneg %p23
    %p30 = scmp.eq.s32.totalorder %s14, 1
    %p31 = por %p29, %p30
    %p32 = scmp.ne.s32.totalorder %s24, %s27
    %p33 = scmp.eq.s32.totalorder %s14, 0
    %p34 = por %p32, %p33
    %p35 = scmp.ne.s32.totalorder %s24, %s27
    %p36 = scmp.eq.s32.totalorder %s19, 1
    %p37 = por %p35, %p36
    %p38 = scmp.ne.s32.totalorder %s27, %s28
    %p39 = scmp.eq.s32.totalorder %s19, 0
    %p40 = por %p38, %p39
    %p41 = scmp.ne.s32.totalorder %s27, %s28
    %p42 = scmp.eq.s32.totalorder %s20, 1
    %p43 = por %p41, %p42
    %p45 = scmp.ne.s32.totalorder %s28, %s44
    %p46 = scmp.eq.s32.totalorder %s20, 0
    %p47 = por %p45, %p46
    %s49 = sadd.s32 %s48, 1
    %p52 = scmp.eq.s32.totalorder %s14, 1
    %p53 = scmp.ne.s32.totalorder %s48, %s50
    %p54 = scmp.eq.s32.totalorder %s14, 0
    %p55 = por %p53, %p54
    %p56 = scmp.ne.s32.totalorder %s48, %s50
    %p57 = scmp.eq.s32.totalorder %s19, 1
    %p58 = por %p56, %p57
    %p59 = scmp.ne.s32.totalorder %s50, %s51
    %p60 = scmp.eq.s32.totalorder %s19, 0
    %p61 = por %p59, %p60
    %p62 = scmp.ne.s32.totalorder %s50, %s51
    %p63 = scmp.eq.s32.totalorder %s20, 1
    %p64 = por %p62, %p63
    %p66 = scmp.ne.s32.totalorder %s51, %s65
    %p67 = scmp.eq.s32.totalorder %s20, 0
    %p68 = por %p66, %p67
    %s70 = sadd.s32 %s69, 1
    %p73 = scmp.eq.s32.totalorder %s14, 1
    %p74 = scmp.ne.s32.totalorder %s69, %s71
    %p75 = scmp.eq.s32.totalorder %s14, 0
    %p76 = por %p74, %p75
    %p77 = scmp.ne.s32.totalorder %s69, %s71
    %p78 = scmp.eq.s32.totalorder %s19, 1
    %p79 = por %p77, %p78
    %p80 = scmp.ne.s32.totalorder %s71, %s72
    %p81 = scmp.eq.s32.totalorder %s19, 0
    %p82 = por %p80, %p81
    %p83 = scmp.ne.s32.totalorder %s71, %s72
    %p84 = scmp.eq.s32.totalorder %s20, 1
    %p85 = por %p83, %p84
    %p87 = scmp.ne.s32.totalorder %s72, %s86
    %p88 = scmp.eq.s32.totalorder %s20, 0
    %p89 = por %p87, %p88
    %s91 = sadd.s32 %s90, 1
    %p94 = scmp.eq.s32.totalorder %s14, 1
    %p95 = scmp.ne.s32.totalorder %s90, %s92
    %p96 = scmp.eq.s32.totalorder %s14, 0
    %p97 = por %p95, %p96
    %p98 = scmp.ne.s32.totalorder %s90, %s92
    %p99 = scmp.eq.s32.totalorder %s19, 1
    %p100 = por %p98, %p99
    %p101 = scmp.ne.s32.totalorder %s92, %s93
    %p102 = scmp.eq.s32.totalorder %s19, 0
    %p103 = por %p101, %p102
    %p104 = scmp.ne.s32.totalorder %s92, %s93
    %p105 = scmp.eq.s32.totalorder %s20, 1
    %p106 = por %p104, %p105
    %p108 = scmp.ne.s32.totalorder %s93, %s107
    %p109 = scmp.eq.s32.totalorder %s20, 0
    %p110 = por %p108, %p109
    %s112 = sadd.s32 %s111, 1
    %p115 = scmp.eq.s32.totalorder %s14, 1
    %p116 = scmp.ne.s32.totalorder %s111, %s113
    %p117 = scmp.eq.s32.totalorder %s14, 0
    %p118 = por %p116, %p117
    %p119 = scmp.ne.s32.totalorder %s111, %s113
    %p120 = scmp.eq.s32.totalorder %s19, 1
    %p121 = por %p119, %p120
    %p122 = scmp.ne.s32.totalorder %s113, %s114
    %p123 = scmp.eq.s32.totalorder %s19, 0
    %p124 = por %p122, %p123
    %p125 = scmp.ne.s32.totalorder %s113, %s114
    %p126 = scmp.eq.s32.totalorder %s20, 1
    %p127 = por %p125, %p126
    %p129 = scmp.ne.s32.totalorder %s114, %s128
    %p130 = scmp.eq.s32.totalorder %s20, 0
    %p131 = por %p129, %p130
    %s133 = sadd.s32 %s132, 1
    %p136 = scmp.eq.s32.totalorder %s14, 1
    %p137 = scmp.ne.s32.totalorder %s132, %s134
    %p138 = scmp.eq.s32.totalorder %s14, 0
    %p139 = por %p137, %p138
    %p140 = scmp.ne.s32.totalorder %s132, %s134
    %p141 = scmp.eq.s32.totalorder %s19, 1
    %p142 = por %p140, %p141
    %p143 = scmp.ne.s32.totalorder %s134, %s135
    %p144 = scmp.eq.s32.totalorder %s19, 0
    %p145 = por %p143, %p144
    %p146 = scmp.ne.s32.totalorder %s134, %s135
    %p147 = scmp.eq.s32.totalorder %s20, 1
    %p148 = por %p146, %p147
    %p150 = scmp.ne.s32.totalorder %s135, %s149
    %p151 = scmp.eq.s32.totalorder %s20, 0
    %p152 = por %p150, %p151
    %s153 = ssub.s32 %s14, %s21
    %p154 = scmp.eq.s32.totalorder %s153, 0
    %s156 = sadd.s32 %s155, 1
    %s157 = scalar_select %p154, %s155, %s156
    %p160 = pneg %p154
    %p161 = scmp.eq.s32.totalorder %s14, 1
    %p162 = por %p160, %p161
    %p163 = scmp.ne.s32.totalorder %s155, %s158
    %p164 = scmp.eq.s32.totalorder %s14, 0
    %p165 = por %p163, %p164
    %p166 = scmp.ne.s32.totalorder %s155, %s158
    %p167 = scmp.eq.s32.totalorder %s19, 1
    %p168 = por %p166, %p167
    %p169 = scmp.ne.s32.totalorder %s158, %s159
    %p170 = scmp.eq.s32.totalorder %s19, 0
    %p171 = por %p169, %p170
    %p172 = scmp.ne.s32.totalorder %s158, %s159
    %p173 = scmp.eq.s32.totalorder %s20, 1
    %p174 = por %p172, %p173
    %p176 = scmp.ne.s32.totalorder %s159, %s175
    %p177 = scmp.eq.s32.totalorder %s20, 0
    %p178 = por %p176, %p177
    %s179 = ssub.s32 %s14, %s21
    %p180 = scmp.eq.s32.totalorder %s179, 0
    %s182 = sadd.s32 %s181, 1
    %s183 = scalar_select %p180, %s181, %s182
    %p186 = pneg %p180
    %p187 = scmp.eq.s32.totalorder %s14, 1
    %p188 = por %p186, %p187
    %p189 = scmp.ne.s32.totalorder %s181, %s184
    %p190 = scmp.eq.s32.totalorder %s14, 0
    %p191 = por %p189, %p190
    %p192 = scmp.ne.s32.totalorder %s181, %s184
    %p193 = scmp.eq.s32.totalorder %s19, 1
    %p194 = por %p192, %p193
    %p195 = scmp.ne.s32.totalorder %s184, %s185
    %p196 = scmp.eq.s32.totalorder %s19, 0
    %p197 = por %p195, %p196
    %p198 = scmp.ne.s32.totalorder %s184, %s185
    %p199 = scmp.eq.s32.totalorder %s20, 1
    %p200 = por %p198, %p199
    %p202 = scmp.ne.s32.totalorder %s185, %s201
    %p203 = scmp.eq.s32.totalorder %s20, 0
    %p204 = por %p202, %p203
    %p205 = scmp.le.s32.totalorder 1, %s14
    %p206 = scmp.lt.s32.totalorder %s14, 3
    %p207 = pnand %p205, %p206
    %p208 = pneg %p207
    // Predicated region
    $region9: #{relation_trans_forward.2} parent=5 // pred_check
      _
    $region10: #{relation_trans_forward.2} parent=5 // pred_check_branch
      %210 = sbr.rel (%p207) target = $region12
    $region11: #{relation_trans_forward.2} parent=5 // pred_region
      %s211 = ssub.s32 %s14, 1
      // Predicated region
      $region13: #{relation_trans_forward.2} parent=11 // pred_check
        %p212 = pneg %p61
      $region14: #{relation_trans_forward.2} parent=11 // pred_check_branch
        %214 = sbr.rel (%p212) target = $region16
      $region15: #{relation_trans_forward.2} parent=11 // pred_region
        _
      $region16: #{relation_trans_forward.2} parent=11 // pred_fallthru
        _
      // Predicated region
      $region17: #{relation_trans_forward.2} parent=11 // pred_check
        %p215 = pneg %p82
      $region18: #{relation_trans_forward.2} parent=11 // pred_check_branch
        %217 = sbr.rel (%p215) target = $region20
      $region19: #{relation_trans_forward.2} parent=11 // pred_region
        _
      $region20: #{relation_trans_forward.2} parent=11 // pred_fallthru
        _
      // Predicated region
      $region21: #{relation_trans_forward.2} parent=11 // pred_check
        %p218 = pneg %p103
      $region22: #{relation_trans_forward.2} parent=11 // pred_check_branch
        %220 = sbr.rel (%p218) target = $region24
      $region23: #{relation_trans_forward.2} parent=11 // pred_region
        _
      $region24: #{relation_trans_forward.2} parent=11 // pred_fallthru
        _
      // Predicated region
      $region25: #{relation_trans_forward.2} parent=11 // pred_check
        %p221 = pneg %p124
      $region26: #{relation_trans_forward.2} parent=11 // pred_check_branch
        %223 = sbr.rel (%p221) target = $region28
      $region27: #{relation_trans_forward.2} parent=11 // pred_region
        _
      $region28: #{relation_trans_forward.2} parent=11 // pred_fallthru
        _
      // Predicated region
      $region29: #{relation_trans_forward.2} parent=11 // pred_check
        %p224 = pneg %p145
      $region30: #{relation_trans_forward.2} parent=11 // pred_check_branch
        %226 = sbr.rel (%p224) target = $region32
      $region31: #{relation_trans_forward.2} parent=11 // pred_region
        _
      $region32: #{relation_trans_forward.2} parent=11 // pred_fallthru
        _
    $region12: #{relation_trans_forward.2} parent=5 // pred_fallthru
      _
    %p227 = scmp.lt.s32.totalorder %s14, 2
    // Predicated region
    $region33: #{relation_trans_forward.2} parent=5 // pred_check
      %p228 = pneg %p227
    $region34: #{relation_trans_forward.2} parent=5 // pred_check_branch
      %230 = sbr.rel (%p228) target = $region36
    $region35: #{relation_trans_forward.2} parent=5 // pred_region
      // Predicated region
      $region37: #{relation_trans_forward.2} parent=35 // pred_check
        %p231 = pneg %p34
      $region38: #{relation_trans_forward.2} parent=35 // pred_check_branch
        %233 = sbr.rel (%p231) target = $region40
      $region39: #{relation_trans_forward.2} parent=35 // pred_region
        %s234 = smul.u32 24, %s14
        %p235 = scmp.lt.s32.totalorder %s234, 47
        %s236 = scalar_select %p235, %s234, 47
        %s237 = smul.addr %s236, 4
        %s238 = scalar_lea.vmem %s0, %s237
        %s239 = smul.u32 24, %s14
      $region40: #{relation_trans_forward.2} parent=35 // pred_fallthru
        _
    $region36: #{relation_trans_forward.2} parent=5 // pred_fallthru
      _
    %p240 = scmp.le.s32.totalorder 1, %s14
    %p241 = scmp.lt.s32.totalorder %s14, 3
    %p242 = pnand %p240, %p241
    %p243 = pneg %p242
    // Predicated region
    $region41: #{relation_trans_forward.2} parent=5 // pred_check
      _
    $region42: #{relation_trans_forward.2} parent=5 // pred_check_branch
      %245 = sbr.rel (%p242) target = $region44
    $region43: #{relation_trans_forward.2} parent=5 // pred_region
      %s246 = ssub.s32 %s14, 1
      %s247 = smul.u32 24, %s19
      %p248 = scmp.lt.s32.totalorder %s247, 47
      %s249 = scalar_select %p248, %s247, 47
      %s250 = smul.addr %s249, 4
      %s251 = scalar_lea.vmem %s0, %s250
      %p252 = pneg %p40
      %p253 = pneg %p37
      %p254 = pneg %p61
      %p255 = pneg %p58
      %p256 = pneg %p82
      %p257 = pneg %p79
      %p258 = pneg %p103
      %p259 = pneg %p100
      %p260 = pneg %p124
      %p261 = pneg %p121
      %p262 = pneg %p145
      %p263 = pneg %p142
      %p264 = pneg %p171
      %p265 = pneg %p168
      %s266 = smul.u32 24, %s19
      %p267 = scmp.lt.s32.totalorder %s266, 47
      %s268 = scalar_select %p267, %s266, 47
      %s269 = smul.addr %s268, 8
      %s270 = scalar_lea.vmem %s6, %s269
      %p271 = pneg %p197
      %p272 = pneg %p194
      %s273 = smul.u32 24, %s19
      %p274 = scmp.lt.s32.totalorder %s273, 47
      %s275 = scalar_select %p274, %s273, 47
      %s276 = smul.addr %s275, 4
      %s277 = scalar_lea.vmem %s7, %s276
      %s278 = smul.u32 24, %s19
      %p279 = scmp.lt.s32.totalorder %s278, 47
      %s280 = scalar_select %p279, %s278, 47
      %s281 = smul.addr %s280, 4
      %s282 = scalar_lea.vmem %s0, %s281
      %s283 = smul.u32 24, %s19
      %s284 = smul.u32 24, %s19
      %p285 = scmp.lt.s32.totalorder %s284, 47
      %s286 = scalar_select %p285, %s284, 47
      %s287 = smul.addr %s286, 8
      %s288 = scalar_lea.vmem %s6, %s287
      %s289 = smul.u32 24, %s19
      %s290 = smul.u32 24, %s19
      %p291 = scmp.lt.s32.totalorder %s290, 47
      %s292 = scalar_select %p291, %s290, 47
      %s293 = smul.addr %s292, 4
      %s294 = scalar_lea.vmem %s7, %s293
      %s295 = smul.u32 24, %s19
      %v297 = vld [vmem:[%s282] sm:$0xf]
      %v298 = vld [vmem:[%s282 + $0x4] sm:$0xf]
      %v299 = vld [vmem:[%s282 + $0x8] sm:$0xf]
      %v300 = vld [vmem:[%s282 + $0xc] sm:$0xf]
      %v301 = vld [vmem:[%s282 + $0x10] sm:$0xf]
      %v302 = vld [vmem:[%s282 + $0x14] sm:$0xf]
      %v303 = vld [vmem:[%s282 + $0x18] sm:$0xf]
      %v304 = vld [vmem:[%s282 + $0x1c] sm:$0xf]
      %v305 = vld [vmem:[%s282 + $0x20] sm:$0xf]
      %v306 = vld [vmem:[%s282 + $0x24] sm:$0xf]
      %v307 = vld [vmem:[%s282 + $0x28] sm:$0xf]
      %v308 = vld [vmem:[%s282 + $0x2c] sm:$0xf]
      %v309 = vld [vmem:[%s282 + $0x30] sm:$0xf]
      %v310 = vld [vmem:[%s282 + $0x34] sm:$0xf]
      %v311 = vld [vmem:[%s282 + $0x38] sm:$0xf]
      %v312 = vld [vmem:[%s282 + $0x3c] sm:$0xf]
      %v313 = vld [vmem:[%s282 + $0x40] sm:$0xf]
      %v314 = vld [vmem:[%s282 + $0x44] sm:$0xf]
      %v315 = vld [vmem:[%s282 + $0x48] sm:$0xf]
      %v316 = vld [vmem:[%s282 + $0x4c] sm:$0xf]
      %v317 = vld [vmem:[%s282 + $0x50] sm:$0xf]
      %v318 = vld [vmem:[%s282 + $0x54] sm:$0xf]
      %v319 = vld [vmem:[%s282 + $0x58] sm:$0xf]
      %v320 = vld [vmem:[%s282 + $0x5c] sm:$0xf]
      %v321 = vld [vmem:[%s4] sm:$0x1]
      %v322 = vld [vmem:[%s4 + $0x1] sm:$0x1]
      %v323 = vld [vmem:[%s1] sm:$0xf]
      %v324 = vld [vmem:[%s1 + $0x4] sm:$0xf]
      %v325 = vld [vmem:[%s1 + $0x8] sm:$0xf]
      %v326 = vld [vmem:[%s1 + $0xc] sm:$0xf]
      %v327 = vld [vmem:[%s1 + $0x10] sm:$0xf]
      %v328 = vld [vmem:[%s1 + $0x14] sm:$0xf]
      %v329 = vld [vmem:[%s1 + $0x18] sm:$0xf]
      %v330 = vld [vmem:[%s1 + $0x1c] sm:$0xf]
      %v331 = vld [vmem:[%s1 + $0x20] sm:$0xf]
      %v332 = vld [vmem:[%s1 + $0x24] sm:$0xf]
      %v333 = vld [vmem:[%s1 + $0x28] sm:$0xf]
      %v334 = vld [vmem:[%s1 + $0x2c] sm:$0xf]
      %v335 = vld [vmem:[%s1 + $0x30] sm:$0xf]
      %v336 = vld [vmem:[%s1 + $0x34] sm:$0xf]
      %v337 = vld [vmem:[%s1 + $0x38] sm:$0xf]
      %v338 = vld [vmem:[%s1 + $0x3c] sm:$0xf]
      %v339 = vlaneseq
      %v340 = vshrl.u32 %v339, 7
      %v341 = vsub.s32 0, %v340
      %v342 = vrot.slane %v321, %v341
      %v367 = vunpack.c.l.b16 %v297
      %v368 = vunpack.c.l.b16 %v298
      %v369 = vunpack.c.l.b16 %v299
      %v370 = vunpack.c.l.b16 %v300
      %v371 = vunpack.c.l.b16 %v301
      %v372 = vunpack.c.l.b16 %v302
      %v373 = vunpack.c.l.b16 %v303
      %v374 = vunpack.c.l.b16 %v304
      %v375 = vunpack.c.l.b16 %v305
      %v376 = vunpack.c.l.b16 %v306
      %v377 = vunpack.c.l.b16 %v307
      %v378 = vunpack.c.l.b16 %v308
      %v379 = vunpack.c.l.b16 %v309
      %v380 = vunpack.c.l.b16 %v310
      %v381 = vunpack.c.l.b16 %v311
      %v382 = vunpack.c.l.b16 %v312
      %v383 = vunpack.c.l.b16 %v313
      %v384 = vunpack.c.l.b16 %v314
      %v385 = vunpack.c.l.b16 %v315
      %v386 = vunpack.c.l.b16 %v316
      %v387 = vunpack.c.l.b16 %v317
      %v388 = vunpack.c.l.b16 %v318
      %v389 = vunpack.c.l.b16 %v319
      %v390 = vunpack.c.l.b16 %v320
      %v391 = vpack.c.b16 %v368, %v367
      %v392 = vpack.c.b16 %v370, %v369
      %v393 = vpack.c.b16 %v372, %v371
      %v394 = vpack.c.b16 %v374, %v373
      %v395 = vpack.c.b16 %v376, %v375
      %v396 = vpack.c.b16 %v378, %v377
      %v397 = vpack.c.b16 %v380, %v379
      %v398 = vpack.c.b16 %v382, %v381
      %v399 = vpack.c.b16 %v384, %v383
      %v400 = vpack.c.b16 %v386, %v385
      %v401 = vpack.c.b16 %v388, %v387
      %v402 = vpack.c.b16 %v390, %v389
      %v431 = vunpack.c.l.b16 %v323
      %v432 = vunpack.c.l.b16 %v324
      %v433 = vunpack.c.l.b16 %v325
      %v434 = vunpack.c.l.b16 %v326
      %v435 = vunpack.c.l.b16 %v327
      %v436 = vunpack.c.l.b16 %v328
      %v437 = vunpack.c.l.b16 %v329
      %v438 = vunpack.c.l.b16 %v330
      %v439 = vunpack.c.l.b16 %v331
      %v440 = vunpack.c.l.b16 %v332
      %v441 = vunpack.c.l.b16 %v333
      %v442 = vunpack.c.l.b16 %v334
      %v443 = vunpack.c.l.b16 %v335
      %v444 = vunpack.c.l.b16 %v336
      %v445 = vunpack.c.l.b16 %v337
      %v446 = vunpack.c.l.b16 %v338
      %v447 = vpack.c.b16 %v432, %v431
      %v448 = vpack.c.b16 %v434, %v433
      %v449 = vpack.c.b16 %v436, %v435
      %v450 = vpack.c.b16 %v438, %v437
      %v451 = vpack.c.b16 %v440, %v439
      %v452 = vpack.c.b16 %v442, %v441
      %v453 = vpack.c.b16 %v444, %v443
      %v454 = vpack.c.b16 %v446, %v445
      %463 = vmatprep.subr.bf16.mxu0 0
      %464 = vmatpush1.bf16.msra.mxu0 %v447
      %465 = vmatprep.subr.bf16.mxu0 0
      %466 = vmatpush1.bf16.msra.mxu0 %v448
      %467 = vmatprep.subr.bf16.mxu0 0
      %468 = vmatpush1.bf16.msra.mxu0 %v449
      %469 = vmatprep.subr.bf16.mxu0 0
      %470 = vmatpush1.bf16.msra.mxu0 %v450
      %471 = vmatprep.subr.bf16.mxu0 0
      %472 = vmatpush1.bf16.msra.mxu0 %v451
      %473 = vmatprep.subr.bf16.mxu0 0
      %474 = vmatpush1.bf16.msra.mxu0 %v452
      %475 = vmatprep.subr.bf16.mxu0 0
      %476 = vmatpush1.bf16.msra.mxu0 %v453
      %477 = vmatprep.subr.bf16.mxu0 0
      %478 = vmatpush1.bf16.msra.mxu0 %v454
      %479 = vmatprep.subr.bf16.mxu0 0
      %480 = vmatpush1.bf16.msra.mxu0 0
      %481 = vmatprep.subr.bf16.mxu0 0
      %482 = vmatpush1.bf16.msra.mxu0 0
      %483 = vmatprep.subr.bf16.mxu0 0
      %484 = vmatpush1.bf16.msra.mxu0 0
      %485 = vmatprep.subr.bf16.mxu0 0
      %486 = vmatpush1.bf16.msra.mxu0 0
      %487 = vmatprep.subr.bf16.mxu0 0
      %488 = vmatpush1.bf16.msra.mxu0 0
      %489 = vmatprep.subr.bf16.mxu0 0
      %490 = vmatpush1.bf16.msra.mxu0 0
      %491 = vmatprep.subr.bf16.mxu0 0
      %492 = vmatpush1.bf16.msra.mxu0 0
      %493 = vmatprep.subr.bf16.mxu0 0
      %494 = vmatpush1.bf16.msra.mxu0 0
      %495 = vmatprep.mubr.bf16.mxu0 0
      %496 = vmatmul.mubr.bf16.gmra.mrb[0].mxu0 %v391
      %v497 = vpop.f32.mrb[0].mxu0
      %v498 = vadd.f32 %v342, %v497
      %v499 = vpop.f32.mrb[0].mxu0
      %v500 = vpop.f32.mrb[0].mxu0
      %v501 = vadd.f32 %v342, %v500
      %v502 = vpop.f32.mrb[0].mxu0
      %503 = vmatprep.mubr.bf16.mxu0 0
      %504 = vmatmul.mubr.bf16.gmra.mrb[0].mxu0 %v392
      %v505 = vpop.f32.mrb[0].mxu0
      %v506 = vadd.f32 %v342, %v505
      %v507 = vpop.f32.mrb[0].mxu0
      %v508 = vpop.f32.mrb[0].mxu0
      %v509 = vadd.f32 %v342, %v508
      %v510 = vpop.f32.mrb[0].mxu0
      %511 = vmatprep.mubr.bf16.mxu0 0
      %512 = vmatmul.mubr.bf16.gmra.mrb[0].mxu0 %v393
      %v513 = vpop.f32.mrb[0].mxu0
      %v514 = vadd.f32 %v342, %v513
      %v515 = vpop.f32.mrb[0].mxu0
      %v516 = vpop.f32.mrb[0].mxu0
      %v517 = vadd.f32 %v342, %v516
      %v518 = vpop.f32.mrb[0].mxu0
      %519 = vmatprep.mubr.bf16.mxu0 0
      %520 = vmatmul.mubr.bf16.gmra.mrb[0].mxu0 %v394
      %v521 = vpop.f32.mrb[0].mxu0
      %v522 = vadd.f32 %v342, %v521
      %v523 = vpop.f32.mrb[0].mxu0
      %v524 = vpop.f32.mrb[0].mxu0
      %v525 = vadd.f32 %v342, %v524
      %v526 = vpop.f32.mrb[0].mxu0
      %527 = vmatprep.mubr.bf16.mxu0 0
      %528 = vmatmul.mubr.bf16.gmra.mrb[0].mxu0 %v395
      %v529 = vpop.f32.mrb[0].mxu0
      %v530 = vadd.f32 %v342, %v529
      %v531 = vpop.f32.mrb[0].mxu0
      %v532 = vpop.f32.mrb[0].mxu0
      %v533 = vadd.f32 %v342, %v532
      %v534 = vpop.f32.mrb[0].mxu0
      %535 = vmatprep.mubr.bf16.mxu0 0
      %536 = vmatmul.mubr.bf16.gmra.mrb[0].mxu0 %v396
      %v537 = vpop.f32.mrb[0].mxu0
      %v538 = vadd.f32 %v342, %v537
      %v539 = vpop.f32.mrb[0].mxu0
      %v540 = vpop.f32.mrb[0].mxu0
      %v541 = vadd.f32 %v342, %v540
      %v542 = vpop.f32.mrb[0].mxu0
      %543 = vmatprep.mubr.bf16.mxu0 0
      %544 = vmatmul.mubr.bf16.gmra.mrb[0].mxu0 %v397
      %v545 = vpop.f32.mrb[0].mxu0
      %v546 = vadd.f32 %v342, %v545
      %v547 = vpop.f32.mrb[0].mxu0
      %v548 = vpop.f32.mrb[0].mxu0
      %v549 = vadd.f32 %v342, %v548
      %v550 = vpop.f32.mrb[0].mxu0
      %551 = vmatprep.mubr.bf16.mxu0 0
      %552 = vmatmul.mubr.bf16.gmra.mrb[0].mxu0 %v398
      %v553 = vpop.f32.mrb[0].mxu0
      %v554 = vadd.f32 %v342, %v553
      %v555 = vpop.f32.mrb[0].mxu0
      %v556 = vpop.f32.mrb[0].mxu0
      %v557 = vadd.f32 %v342, %v556
      %v558 = vpop.f32.mrb[0].mxu0
      %559 = vmatprep.mubr.bf16.mxu0 0
      %560 = vmatmul.mubr.bf16.gmra.mrb[0].mxu0 %v399
      %v561 = vpop.f32.mrb[0].mxu0
      %v562 = vadd.f32 %v342, %v561
      %v563 = vpop.f32.mrb[0].mxu0
      %v564 = vpop.f32.mrb[0].mxu0
      %v565 = vadd.f32 %v342, %v564
      %v566 = vpop.f32.mrb[0].mxu0
      %567 = vmatprep.mubr.bf16.mxu0 0
      %568 = vmatmul.mubr.bf16.gmra.mrb[0].mxu0 %v400
      %v569 = vpop.f32.mrb[0].mxu0
      %v570 = vadd.f32 %v342, %v569
      %v571 = vpop.f32.mrb[0].mxu0
      %v572 = vpop.f32.mrb[0].mxu0
      %v573 = vadd.f32 %v342, %v572
      %v574 = vpop.f32.mrb[0].mxu0
      %575 = vmatprep.mubr.bf16.mxu0 0
      %576 = vmatmul.mubr.bf16.gmra.mrb[0].mxu0 %v401
      %v577 = vpop.f32.mrb[0].mxu0
      %v578 = vadd.f32 %v342, %v577
      %v579 = vpop.f32.mrb[0].mxu0
      %v580 = vpop.f32.mrb[0].mxu0
      %v581 = vadd.f32 %v342, %v580
      %v582 = vpop.f32.mrb[0].mxu0
      %583 = vmatprep.mubr.bf16.mxu0 0
      %584 = vmatmul.mubr.bf16.gmra.mrb[0].mxu0 %v402
      %v585 = vpop.f32.mrb[0].mxu0
      %v586 = vadd.f32 %v342, %v585
      %v587 = vpop.f32.mrb[0].mxu0
      %v588 = vpop.f32.mrb[0].mxu0
      %v589 = vadd.f32 %v342, %v588
      %v590 = vpop.f32.mrb[0].mxu0
      %591 = vdwg.mxu0
      %v592 = vmax.f32 %v498, 0.0
      %v593 = vmax.f32 %v501, 0.0
      %v594 = vmax.f32 %v506, 0.0
      %v595 = vmax.f32 %v509, 0.0
      %v596 = vmax.f32 %v514, 0.0
      %v597 = vmax.f32 %v517, 0.0
      %v598 = vmax.f32 %v522, 0.0
      %v599 = vmax.f32 %v525, 0.0
      %v600 = vmax.f32 %v530, 0.0
      %v601 = vmax.f32 %v533, 0.0
      %v602 = vmax.f32 %v538, 0.0
      %v603 = vmax.f32 %v541, 0.0
      %v604 = vmax.f32 %v546, 0.0
      %v605 = vmax.f32 %v549, 0.0
      %v606 = vmax.f32 %v554, 0.0
      %v607 = vmax.f32 %v557, 0.0
      %v608 = vmax.f32 %v562, 0.0
      %v609 = vmax.f32 %v565, 0.0
      %v610 = vmax.f32 %v570, 0.0
      %v611 = vmax.f32 %v573, 0.0
      %v612 = vmax.f32 %v578, 0.0
      %v613 = vmax.f32 %v581, 0.0
      %v614 = vmax.f32 %v586, 0.0
      %v615 = vmax.f32 %v589, 0.0
      %v616 = vpack.c.bf16 %v593, %v592
      %v617 = vpack.c.bf16 %v595, %v594
      %v618 = vpack.c.bf16 %v597, %v596
      %v619 = vpack.c.bf16 %v599, %v598
      %v620 = vpack.c.bf16 %v601, %v600
      %v621 = vpack.c.bf16 %v603, %v602
      %v622 = vpack.c.bf16 %v605, %v604
      %v623 = vpack.c.bf16 %v607, %v606
      %v624 = vpack.c.bf16 %v609, %v608
      %v625 = vpack.c.bf16 %v611, %v610
      %v626 = vpack.c.bf16 %v613, %v612
      %v627 = vpack.c.bf16 %v615, %v614
      %v628 = vld [vmem:[%s2] sm:$0xf]
      %v629 = vld [vmem:[%s2 + $0x4] sm:$0xf]
      %v630 = vld [vmem:[%s2 + $0x8] sm:$0xf]
      %v631 = vld [vmem:[%s2 + $0xc] sm:$0xf]
      %v632 = vlaneseq
      %v633 = vshrl.u32 %v632, 7
      %v634 = vsub.s32 0, %v633
      %v635 = vrot.slane %v322, %v634
      %v640 = vunpack.c.l.b16 %v628
      %v641 = vunpack.c.l.b16 %v629
      %v642 = vunpack.c.l.b16 %v630
      %v643 = vunpack.c.l.b16 %v631
      %v644 = vpack.c.b16 %v641, %v640
      %v645 = vpack.c.b16 %v643, %v642
      %vm648 = vcmask 261120
      %v650 = vsel %vm648, %v616, 0
      %v653 = vsel %vm648, %v617, 0
      %v656 = vsel %vm648, %v618, 0
      %v659 = vsel %vm648, %v619, 0
      %v662 = vsel %vm648, %v620, 0
      %v665 = vsel %vm648, %v621, 0
      %v668 = vsel %vm648, %v622, 0
      %v671 = vsel %vm648, %v623, 0
      %v674 = vsel %vm648, %v624, 0
      %v677 = vsel %vm648, %v625, 0
      %v680 = vsel %vm648, %v626, 0
      %v683 = vsel %vm648, %v627, 0
      %685 = vmatprep.subr.bf16.mxu0 0
      %686 = vmatpush1.bf16.msra.mxu0 %v644
      %687 = vmatprep.subr.bf16.mxu0 0
      %688 = vmatpush1.bf16.msra.mxu0 %v645
      %689 = vmatprep.subr.bf16.mxu0 0
      %690 = vmatpush1.bf16.msra.mxu0 0
      %691 = vmatprep.subr.bf16.mxu0 0
      %692 = vmatpush1.bf16.msra.mxu0 0
      %693 = vmatprep.subr.bf16.mxu0 0
      %694 = vmatpush1.bf16.msra.mxu0 0
      %695 = vmatprep.subr.bf16.mxu0 0
      %696 = vmatpush1.bf16.msra.mxu0 0
      %697 = vmatprep.subr.bf16.mxu0 0
      %698 = vmatpush1.bf16.msra.mxu0 0
      %699 = vmatprep.subr.bf16.mxu0 0
      %700 = vmatpush1.bf16.msra.mxu0 0
      %701 = vmatprep.subr.bf16.mxu0 0
      %702 = vmatpush1.bf16.msra.mxu0 0
      %703 = vmatprep.subr.bf16.mxu0 0
      %704 = vmatpush1.bf16.msra.mxu0 0
      %705 = vmatprep.subr.bf16.mxu0 0
      %706 = vmatpush1.bf16.msra.mxu0 0
      %707 = vmatprep.subr.bf16.mxu0 0
      %708 = vmatpush1.bf16.msra.mxu0 0
      %709 = vmatprep.subr.bf16.mxu0 0
      %710 = vmatpush1.bf16.msra.mxu0 0
      %711 = vmatprep.subr.bf16.mxu0 0
      %712 = vmatpush1.bf16.msra.mxu0 0
      %713 = vmatprep.subr.bf16.mxu0 0
      %714 = vmatpush1.bf16.msra.mxu0 0
      %715 = vmatprep.subr.bf16.mxu0 0
      %716 = vmatpush1.bf16.msra.mxu0 0
      %717 = vmatprep.mubr.bf16.mxu0 0
      %718 = vmatmul.mubr.bf16.gmra.mrb[0].mxu0 %v650
      %v719 = vpop.f32.mrb[0].mxu0
      %v720 = vadd.f32 %v635, %v719
      %v721 = vpop.f32.mrb[0].mxu0
      %v722 = vpop.f32.mrb[0].mxu0
      %v723 = vadd.f32 %v635, %v722
      %v724 = vpop.f32.mrb[0].mxu0
      %725 = vmatprep.mubr.bf16.mxu0 0
      %726 = vmatmul.mubr.bf16.gmra.mrb[0].mxu0 %v653
      %v727 = vpop.f32.mrb[0].mxu0
      %v728 = vadd.f32 %v635, %v727
      %v729 = vpop.f32.mrb[0].mxu0
      %v730 = vpop.f32.mrb[0].mxu0
      %v731 = vadd.f32 %v635, %v730
      %v732 = vpop.f32.mrb[0].mxu0
      %733 = vmatprep.mubr.bf16.mxu0 0
      %734 = vmatmul.mubr.bf16.gmra.mrb[0].mxu0 %v656
      %v735 = vpop.f32.mrb[0].mxu0
      %v736 = vadd.f32 %v635, %v735
      %v737 = vpop.f32.mrb[0].mxu0
      %v738 = vpop.f32.mrb[0].mxu0
      %v739 = vadd.f32 %v635, %v738
      %v740 = vpop.f32.mrb[0].mxu0
      %741 = vmatprep.mubr.bf16.mxu0 0
      %742 = vmatmul.mubr.bf16.gmra.mrb[0].mxu0 %v659
      %v743 = vpop.f32.mrb[0].mxu0
      %v744 = vadd.f32 %v635, %v743
      %v745 = vpop.f32.mrb[0].mxu0
      %v746 = vpop.f32.mrb[0].mxu0
      %v747 = vadd.f32 %v635, %v746
      %v748 = vpop.f32.mrb[0].mxu0
      %749 = vmatprep.mubr.bf16.mxu0 0
      %750 = vmatmul.mubr.bf16.gmra.mrb[0].mxu0 %v662
      %v751 = vpop.f32.mrb[0].mxu0
      %v752 = vadd.f32 %v635, %v751
      %v753 = vpop.f32.mrb[0].mxu0
      %v754 = vpop.f32.mrb[0].mxu0
      %v755 = vadd.f32 %v635, %v754
      %v756 = vpop.f32.mrb[0].mxu0
      %757 = vmatprep.mubr.bf16.mxu0 0
      %758 = vmatmul.mubr.bf16.gmra.mrb[0].mxu0 %v665
      %v759 = vpop.f32.mrb[0].mxu0
      %v760 = vadd.f32 %v635, %v759
      %v761 = vpop.f32.mrb[0].mxu0
      %v762 = vpop.f32.mrb[0].mxu0
      %v763 = vadd.f32 %v635, %v762
      %v764 = vpop.f32.mrb[0].mxu0
      %765 = vmatprep.mubr.bf16.mxu0 0
      %766 = vmatmul.mubr.bf16.gmra.mrb[0].mxu0 %v668
      %v767 = vpop.f32.mrb[0].mxu0
      %v768 = vadd.f32 %v635, %v767
      %v769 = vpop.f32.mrb[0].mxu0
      %v770 = vpop.f32.mrb[0].mxu0
      %v771 = vadd.f32 %v635, %v770
      %v772 = vpop.f32.mrb[0].mxu0
      %773 = vmatprep.mubr.bf16.mxu0 0
      %774 = vmatmul.mubr.bf16.gmra.mrb[0].mxu0 %v671
      %v775 = vpop.f32.mrb[0].mxu0
      %v776 = vadd.f32 %v635, %v775
      %v777 = vpop.f32.mrb[0].mxu0
      %v778 = vpop.f32.mrb[0].mxu0
      %v779 = vadd.f32 %v635, %v778
      %v780 = vpop.f32.mrb[0].mxu0
      %781 = vmatprep.mubr.bf16.mxu0 0
      %782 = vmatmul.mubr.bf16.gmra.mrb[0].mxu0 %v674
      %v783 = vpop.f32.mrb[0].mxu0
      %v784 = vadd.f32 %v635, %v783
      %v785 = vpop.f32.mrb[0].mxu0
      %v786 = vpop.f32.mrb[0].mxu0
      %v787 = vadd.f32 %v635, %v786
      %v788 = vpop.f32.mrb[0].mxu0
      %789 = vmatprep.mubr.bf16.mxu0 0
      %790 = vmatmul.mubr.bf16.gmra.mrb[0].mxu0 %v677
      %v791 = vpop.f32.mrb[0].mxu0
      %v792 = vadd.f32 %v635, %v791
      %v793 = vpop.f32.mrb[0].mxu0
      %v794 = vpop.f32.mrb[0].mxu0
      %v795 = vadd.f32 %v635, %v794
      %v796 = vpop.f32.mrb[0].mxu0
      %797 = vmatprep.mubr.bf16.mxu0 0
      %798 = vmatmul.mubr.bf16.gmra.mrb[0].mxu0 %v680
      %v799 = vpop.f32.mrb[0].mxu0
      %v800 = vadd.f32 %v635, %v799
      %v801 = vpop.f32.mrb[0].mxu0
      %v802 = vpop.f32.mrb[0].mxu0
      %v803 = vadd.f32 %v635, %v802
      %v804 = vpop.f32.mrb[0].mxu0
      %805 = vmatprep.mubr.bf16.mxu0 0
      %806 = vmatmul.mubr.bf16.gmra.mrb[0].mxu0 %v683
      %v807 = vpop.f32.mrb[0].mxu0
      %v808 = vadd.f32 %v635, %v807
      %v809 = vpop.f32.mrb[0].mxu0
      %v810 = vpop.f32.mrb[0].mxu0
      %v811 = vadd.f32 %v635, %v810
      %v812 = vpop.f32.mrb[0].mxu0
      %813 = vdwg.mxu0
      %814 = vst.msk [vmem:[%s288] sm:$0xff] %vm648, %v720
      %815 = vst.msk [vmem:[%s288 + $0x8] sm:$0xff] %vm648, %v723
      %816 = vst.msk [vmem:[%s288 + $0x10] sm:$0xff] %vm648, %v728
      %817 = vst.msk [vmem:[%s288 + $0x18] sm:$0xff] %vm648, %v731
      %818 = vst.msk [vmem:[%s288 + $0x20] sm:$0xff] %vm648, %v736
      %819 = vst.msk [vmem:[%s288 + $0x28] sm:$0xff] %vm648, %v739
      %820 = vst.msk [vmem:[%s288 + $0x30] sm:$0xff] %vm648, %v744
      %821 = vst.msk [vmem:[%s288 + $0x38] sm:$0xff] %vm648, %v747
      %822 = vst.msk [vmem:[%s288 + $0x40] sm:$0xff] %vm648, %v752
      %823 = vst.msk [vmem:[%s288 + $0x48] sm:$0xff] %vm648, %v755
      %824 = vst.msk [vmem:[%s288 + $0x50] sm:$0xff] %vm648, %v760
      %825 = vst.msk [vmem:[%s288 + $0x58] sm:$0xff] %vm648, %v763
      %826 = vst.msk [vmem:[%s288 + $0x60] sm:$0xff] %vm648, %v768
      %827 = vst.msk [vmem:[%s288 + $0x68] sm:$0xff] %vm648, %v771
      %828 = vst.msk [vmem:[%s288 + $0x70] sm:$0xff] %vm648, %v776
      %829 = vst.msk [vmem:[%s288 + $0x78] sm:$0xff] %vm648, %v779
      %830 = vst.msk [vmem:[%s288 + $0x80] sm:$0xff] %vm648, %v784
      %831 = vst.msk [vmem:[%s288 + $0x88] sm:$0xff] %vm648, %v787
      %832 = vst.msk [vmem:[%s288 + $0x90] sm:$0xff] %vm648, %v792
      %833 = vst.msk [vmem:[%s288 + $0x98] sm:$0xff] %vm648, %v795
      %834 = vst.msk [vmem:[%s288 + $0xa0] sm:$0xff] %vm648, %v800
      %835 = vst.msk [vmem:[%s288 + $0xa8] sm:$0xff] %vm648, %v803
      %836 = vst.msk [vmem:[%s288 + $0xb0] sm:$0xff] %vm648, %v808
      %837 = vst.msk [vmem:[%s288 + $0xb8] sm:$0xff] %vm648, %v811
      %v838 = vpack.c.bf16 %v723, %v720
      %v839 = vpack.c.bf16 %v731, %v728
      %v840 = vpack.c.bf16 %v739, %v736
      %v841 = vpack.c.bf16 %v747, %v744
      %v842 = vpack.c.bf16 %v755, %v752
      %v843 = vpack.c.bf16 %v763, %v760
      %v844 = vpack.c.bf16 %v771, %v768
      %v845 = vpack.c.bf16 %v779, %v776
      %v846 = vpack.c.bf16 %v787, %v784
      %v847 = vpack.c.bf16 %v795, %v792
      %v848 = vpack.c.bf16 %v803, %v800
      %v849 = vpack.c.bf16 %v811, %v808
      %v850 = vld [vmem:[%s3] sm:$0xf]
      %v851 = vld [vmem:[%s3 + $0x4] sm:$0xf]
      %v852 = vld [vmem:[%s3 + $0x8] sm:$0xf]
      %v853 = vld [vmem:[%s3 + $0xc] sm:$0xf]
      %v854 = vld [vmem:[%s5] sm:$0x1]
      %v856 = vlaneseq
      %v857 = vshrl.u32 %v856, 7
      %v858 = vsub.s32 0, %v857
      %v859 = vrot.slane %v854, %v858
      %v865 = vunpack.c.l.b16 %v850
      %v866 = vunpack.c.l.b16 %v851
      %v867 = vunpack.c.l.b16 %v852
      %v868 = vunpack.c.l.b16 %v853
      %v869 = vpack.c.b16 %v866, %v865
      %v870 = vpack.c.b16 %v868, %v867
      %v874 = vsel %vm648, %v838, 0
      %v877 = vsel %vm648, %v839, 0
      %v880 = vsel %vm648, %v840, 0
      %v883 = vsel %vm648, %v841, 0
      %v886 = vsel %vm648, %v842, 0
      %v889 = vsel %vm648, %v843, 0
      %v892 = vsel %vm648, %v844, 0
      %v895 = vsel %vm648, %v845, 0
      %v898 = vsel %vm648, %v846, 0
      %v901 = vsel %vm648, %v847, 0
      %v904 = vsel %vm648, %v848, 0
      %v907 = vsel %vm648, %v849, 0
      %909 = vmatprep.subr.bf16.mxu0 0
      %910 = vmatpush1.bf16.msra.mxu0 %v869
      %911 = vmatprep.subr.bf16.mxu0 0
      %912 = vmatpush1.bf16.msra.mxu0 %v870
      %913 = vmatprep.subr.bf16.mxu0 0
      %914 = vmatpush1.bf16.msra.mxu0 0
      %915 = vmatprep.subr.bf16.mxu0 0
      %916 = vmatpush1.bf16.msra.mxu0 0
      %917 = vmatprep.subr.bf16.mxu0 0
      %918 = vmatpush1.bf16.msra.mxu0 0
      %919 = vmatprep.subr.bf16.mxu0 0
      %920 = vmatpush1.bf16.msra.mxu0 0
      %921 = vmatprep.subr.bf16.mxu0 0
      %922 = vmatpush1.bf16.msra.mxu0 0
      %923 = vmatprep.subr.bf16.mxu0 0
      %924 = vmatpush1.bf16.msra.mxu0 0
      %925 = vmatprep.subr.bf16.mxu0 0
      %926 = vmatpush1.bf16.msra.mxu0 0
      %927 = vmatprep.subr.bf16.mxu0 0
      %928 = vmatpush1.bf16.msra.mxu0 0
      %929 = vmatprep.subr.bf16.mxu0 0
      %930 = vmatpush1.bf16.msra.mxu0 0
      %931 = vmatprep.subr.bf16.mxu0 0
      %932 = vmatpush1.bf16.msra.mxu0 0
      %933 = vmatprep.subr.bf16.mxu0 0
      %934 = vmatpush1.bf16.msra.mxu0 0
      %935 = vmatprep.subr.bf16.mxu0 0
      %936 = vmatpush1.bf16.msra.mxu0 0
      %937 = vmatprep.subr.bf16.mxu0 0
      %938 = vmatpush1.bf16.msra.mxu0 0
      %939 = vmatprep.subr.bf16.mxu0 0
      %940 = vmatpush1.bf16.msra.mxu0 0
      %941 = vmatprep.mubr.bf16.mxu0 0
      %942 = vmatmul.mubr.bf16.gmra.mrb[0].mxu0 %v874
      %v943 = vpop.f32.mrb[0].mxu0
      %v944 = vadd.f32 %v859, %v943
      %v945 = vpop.f32.mrb[0].mxu0
      %v946 = vpop.f32.mrb[0].mxu0
      %v947 = vadd.f32 %v859, %v946
      %v948 = vpop.f32.mrb[0].mxu0
      %949 = vmatprep.mubr.bf16.mxu0 0
      %950 = vmatmul.mubr.bf16.gmra.mrb[0].mxu0 %v877
      %v951 = vpop.f32.mrb[0].mxu0
      %v952 = vadd.f32 %v859, %v951
      %v953 = vpop.f32.mrb[0].mxu0
      %v954 = vpop.f32.mrb[0].mxu0
      %v955 = vadd.f32 %v859, %v954
      %v956 = vpop.f32.mrb[0].mxu0
      %957 = vmatprep.mubr.bf16.mxu0 0
      %958 = vmatmul.mubr.bf16.gmra.mrb[0].mxu0 %v880
      %v959 = vpop.f32.mrb[0].mxu0
      %v960 = vadd.f32 %v859, %v959
      %v961 = vpop.f32.mrb[0].mxu0
      %v962 = vpop.f32.mrb[0].mxu0
      %v963 = vadd.f32 %v859, %v962
      %v964 = vpop.f32.mrb[0].mxu0
      %965 = vmatprep.mubr.bf16.mxu0 0
      %966 = vmatmul.mubr.bf16.gmra.mrb[0].mxu0 %v883
      %v967 = vpop.f32.mrb[0].mxu0
      %v968 = vadd.f32 %v859, %v967
      %v969 = vpop.f32.mrb[0].mxu0
      %v970 = vpop.f32.mrb[0].mxu0
      %v971 = vadd.f32 %v859, %v970
      %v972 = vpop.f32.mrb[0].mxu0
      %973 = vmatprep.mubr.bf16.mxu0 0
      %974 = vmatmul.mubr.bf16.gmra.mrb[0].mxu0 %v886
      %v975 = vpop.f32.mrb[0].mxu0
      %v976 = vadd.f32 %v859, %v975
      %v977 = vpop.f32.mrb[0].mxu0
      %v978 = vpop.f32.mrb[0].mxu0
      %v979 = vadd.f32 %v859, %v978
      %v980 = vpop.f32.mrb[0].mxu0
      %981 = vmatprep.mubr.bf16.mxu0 0
      %982 = vmatmul.mubr.bf16.gmra.mrb[0].mxu0 %v889
      %v983 = vpop.f32.mrb[0].mxu0
      %v984 = vadd.f32 %v859, %v983
      %v985 = vpop.f32.mrb[0].mxu0
      %v986 = vpop.f32.mrb[0].mxu0
      %v987 = vadd.f32 %v859, %v986
      %v988 = vpop.f32.mrb[0].mxu0
      %989 = vmatprep.mubr.bf16.mxu0 0
      %990 = vmatmul.mubr.bf16.gmra.mrb[0].mxu0 %v892
      %v991 = vpop.f32.mrb[0].mxu0
      %v992 = vadd.f32 %v859, %v991
      %v993 = vpop.f32.mrb[0].mxu0
      %v994 = vpop.f32.mrb[0].mxu0
      %v995 = vadd.f32 %v859, %v994
      %v996 = vpop.f32.mrb[0].mxu0
      %997 = vmatprep.mubr.bf16.mxu0 0
      %998 = vmatmul.mubr.bf16.gmra.mrb[0].mxu0 %v895
      %v999 = vpop.f32.mrb[0].mxu0
      %v1000 = vadd.f32 %v859, %v999
      %v1001 = vpop.f32.mrb[0].mxu0
      %v1002 = vpop.f32.mrb[0].mxu0
      %v1003 = vadd.f32 %v859, %v1002
      %v1004 = vpop.f32.mrb[0].mxu0
      %1005 = vmatprep.mubr.bf16.mxu0 0
      %1006 = vmatmul.mubr.bf16.gmra.mrb[0].mxu0 %v898
      %v1007 = vpop.f32.mrb[0].mxu0
      %v1008 = vadd.f32 %v859, %v1007
      %v1009 = vpop.f32.mrb[0].mxu0
      %v1010 = vpop.f32.mrb[0].mxu0
      %v1011 = vadd.f32 %v859, %v1010
      %v1012 = vpop.f32.mrb[0].mxu0
      %1013 = vmatprep.mubr.bf16.mxu0 0
      %1014 = vmatmul.mubr.bf16.gmra.mrb[0].mxu0 %v901
      %v1015 = vpop.f32.mrb[0].mxu0
      %v1016 = vadd.f32 %v859, %v1015
      %v1017 = vpop.f32.mrb[0].mxu0
      %v1018 = vpop.f32.mrb[0].mxu0
      %v1019 = vadd.f32 %v859, %v1018
      %v1020 = vpop.f32.mrb[0].mxu0
      %1021 = vmatprep.mubr.bf16.mxu0 0
      %1022 = vmatmul.mubr.bf16.gmra.mrb[0].mxu0 %v904
      %v1023 = vpop.f32.mrb[0].mxu0
      %v1024 = vadd.f32 %v859, %v1023
      %v1025 = vpop.f32.mrb[0].mxu0
      %v1026 = vpop.f32.mrb[0].mxu0
      %v1027 = vadd.f32 %v859, %v1026
      %v1028 = vpop.f32.mrb[0].mxu0
      %1029 = vmatprep.mubr.bf16.mxu0 0
      %1030 = vmatmul.mubr.bf16.gmra.mrb[0].mxu0 %v907
      %v1031 = vpop.f32.mrb[0].mxu0
      %v1032 = vadd.f32 %v859, %v1031
      %v1033 = vpop.f32.mrb[0].mxu0
      %v1034 = vpop.f32.mrb[0].mxu0
      %v1035 = vadd.f32 %v859, %v1034
      %v1036 = vpop.f32.mrb[0].mxu0
      %1037 = vdwg.mxu0
      %v1038 = vpack.c.bf16 %v947, %v944
      %v1039 = vpack.c.bf16 %v955, %v952
      %v1040 = vpack.c.bf16 %v963, %v960
      %v1041 = vpack.c.bf16 %v971, %v968
      %v1042 = vpack.c.bf16 %v979, %v976
      %v1043 = vpack.c.bf16 %v987, %v984
      %v1044 = vpack.c.bf16 %v995, %v992
      %v1045 = vpack.c.bf16 %v1003, %v1000
      %v1046 = vpack.c.bf16 %v1011, %v1008
      %v1047 = vpack.c.bf16 %v1019, %v1016
      %v1048 = vpack.c.bf16 %v1027, %v1024
      %v1049 = vpack.c.bf16 %v1035, %v1032
      %v1062 = vunpack.c.l.b16 %v1038
      %v1063 = vunpack.c.h.b16 %v1038
      %v1064 = vunpack.c.l.b16 %v1039
      %v1065 = vunpack.c.h.b16 %v1039
      %v1066 = vunpack.c.l.b16 %v1040
      %v1067 = vunpack.c.h.b16 %v1040
      %v1068 = vunpack.c.l.b16 %v1041
      %v1069 = vunpack.c.h.b16 %v1041
      %v1070 = vunpack.c.l.b16 %v1042
      %v1071 = vunpack.c.h.b16 %v1042
      %v1072 = vunpack.c.l.b16 %v1043
      %v1073 = vunpack.c.h.b16 %v1043
      %v1074 = vunpack.c.l.b16 %v1044
      %v1075 = vunpack.c.h.b16 %v1044
      %v1076 = vunpack.c.l.b16 %v1045
      %v1077 = vunpack.c.h.b16 %v1045
      %v1078 = vunpack.c.l.b16 %v1046
      %v1079 = vunpack.c.h.b16 %v1046
      %v1080 = vunpack.c.l.b16 %v1047
      %v1081 = vunpack.c.h.b16 %v1047
      %v1082 = vunpack.c.l.b16 %v1048
      %v1083 = vunpack.c.h.b16 %v1048
      %v1084 = vunpack.c.l.b16 %v1049
      %v1085 = vunpack.c.h.b16 %v1049
      %v1086 = vpack.c.b16 %v1062, %v1062
      %v1087 = vpack.c.b16 %v1063, %v1063
      %v1088 = vpack.c.b16 %v1064, %v1064
      %v1089 = vpack.c.b16 %v1065, %v1065
      %v1090 = vpack.c.b16 %v1066, %v1066
      %v1091 = vpack.c.b16 %v1067, %v1067
      %v1092 = vpack.c.b16 %v1068, %v1068
      %v1093 = vpack.c.b16 %v1069, %v1069
      %v1094 = vpack.c.b16 %v1070, %v1070
      %v1095 = vpack.c.b16 %v1071, %v1071
      %v1096 = vpack.c.b16 %v1072, %v1072
      %v1097 = vpack.c.b16 %v1073, %v1073
      %v1098 = vpack.c.b16 %v1074, %v1074
      %v1099 = vpack.c.b16 %v1075, %v1075
      %v1100 = vpack.c.b16 %v1076, %v1076
      %v1101 = vpack.c.b16 %v1077, %v1077
      %v1102 = vpack.c.b16 %v1078, %v1078
      %v1103 = vpack.c.b16 %v1079, %v1079
      %v1104 = vpack.c.b16 %v1080, %v1080
      %v1105 = vpack.c.b16 %v1081, %v1081
      %v1106 = vpack.c.b16 %v1082, %v1082
      %v1107 = vpack.c.b16 %v1083, %v1083
      %v1108 = vpack.c.b16 %v1084, %v1084
      %v1109 = vpack.c.b16 %v1085, %v1085
      %vm1134 = vcmask 519168
      %1135 = vst.msk [vmem:[%s294] sm:$0xf] %vm1134, %v1086
      %1136 = vst.msk [vmem:[%s294 + $0x4] sm:$0xf] %vm1134, %v1087
      %1137 = vst.msk [vmem:[%s294 + $0x8] sm:$0xf] %vm1134, %v1088
      %1138 = vst.msk [vmem:[%s294 + $0xc] sm:$0xf] %vm1134, %v1089
      %1139 = vst.msk [vmem:[%s294 + $0x10] sm:$0xf] %vm1134, %v1090
      %1140 = vst.msk [vmem:[%s294 + $0x14] sm:$0xf] %vm1134, %v1091
      %1141 = vst.msk [vmem:[%s294 + $0x18] sm:$0xf] %vm1134, %v1092
      %1142 = vst.msk [vmem:[%s294 + $0x1c] sm:$0xf] %vm1134, %v1093
      %1143 = vst.msk [vmem:[%s294 + $0x20] sm:$0xf] %vm1134, %v1094
      %1144 = vst.msk [vmem:[%s294 + $0x24] sm:$0xf] %vm1134, %v1095
      %1145 = vst.msk [vmem:[%s294 + $0x28] sm:$0xf] %vm1134, %v1096
      %1146 = vst.msk [vmem:[%s294 + $0x2c] sm:$0xf] %vm1134, %v1097
      %1147 = vst.msk [vmem:[%s294 + $0x30] sm:$0xf] %vm1134, %v1098
      %1148 = vst.msk [vmem:[%s294 + $0x34] sm:$0xf] %vm1134, %v1099
      %1149 = vst.msk [vmem:[%s294 + $0x38] sm:$0xf] %vm1134, %v1100
      %1150 = vst.msk [vmem:[%s294 + $0x3c] sm:$0xf] %vm1134, %v1101
      %1151 = vst.msk [vmem:[%s294 + $0x40] sm:$0xf] %vm1134, %v1102
      %1152 = vst.msk [vmem:[%s294 + $0x44] sm:$0xf] %vm1134, %v1103
      %1153 = vst.msk [vmem:[%s294 + $0x48] sm:$0xf] %vm1134, %v1104
      %1154 = vst.msk [vmem:[%s294 + $0x4c] sm:$0xf] %vm1134, %v1105
      %1155 = vst.msk [vmem:[%s294 + $0x50] sm:$0xf] %vm1134, %v1106
      %1156 = vst.msk [vmem:[%s294 + $0x54] sm:$0xf] %vm1134, %v1107
      %1157 = vst.msk [vmem:[%s294 + $0x58] sm:$0xf] %vm1134, %v1108
      %1158 = vst.msk [vmem:[%s294 + $0x5c] sm:$0xf] %vm1134, %v1109
      %s1159 = smul.u32 24, %s19
      %p1160 = scmp.lt.s32.totalorder %s1159, 47
      %s1161 = scalar_select %p1160, %s1159, 47
      %s1162 = smul.addr %s1161, 8
      %s1163 = scalar_lea.vmem %s6, %s1162
      %s1164 = smul.u32 24, %s19
      %p1165 = scmp.lt.s32.totalorder %s1164, 47
      %s1166 = scalar_select %p1165, %s1164, 47
      %s1167 = smul.addr %s1166, 4
      %s1168 = scalar_lea.vmem %s7, %s1167
      // Predicated region
      $region45: #{relation_trans_forward.2} parent=43 // pred_check
        %p1169 = pneg %p168
      $region46: #{relation_trans_forward.2} parent=43 // pred_check_branch
        %1171 = sbr.rel (%p1169) target = $region48
      $region47: #{relation_trans_forward.2} parent=43 // pred_region
        %s1172 = smul.u32 24, %s19
      $region48: #{relation_trans_forward.2} parent=43 // pred_fallthru
        _
      // Predicated region
      $region49: #{relation_trans_forward.2} parent=43 // pred_check
        %p1173 = pneg %p194
      $region50: #{relation_trans_forward.2} parent=43 // pred_check_branch
        %1175 = sbr.rel (%p1173) target = $region52
      $region51: #{relation_trans_forward.2} parent=43 // pred_region
        %s1176 = smul.u32 24, %s19
      $region52: #{relation_trans_forward.2} parent=43 // pred_fallthru
        _
    $region44: #{relation_trans_forward.2} parent=5 // pred_fallthru
      _
    %p1177 = scmp.le.s32.totalorder 2, %s14
    // Predicated region
    $region53: #{relation_trans_forward.2} parent=5 // pred_check
      %p1178 = pneg %p1177
    $region54: #{relation_trans_forward.2} parent=5 // pred_check_branch
      %1180 = sbr.rel (%p1178) target = $region56
    $region55: #{relation_trans_forward.2} parent=5 // pred_region
      %s1181 = ssub.s32 %s14, 2
      // Predicated region
      $region57: #{relation_trans_forward.2} parent=55 // pred_check
        %p1182 = pneg %p174
      $region58: #{relation_trans_forward.2} parent=55 // pred_check_branch
        %1184 = sbr.rel (%p1182) target = $region60
      $region59: #{relation_trans_forward.2} parent=55 // pred_region
        %s1185 = smul.u32 24, %s20
        %p1186 = scmp.lt.s32.totalorder %s1185, 47
        %s1187 = scalar_select %p1186, %s1185, 47
        %s1188 = smul.addr %s1187, 8
        %s1189 = scalar_lea.vmem %s6, %s1188
      $region60: #{relation_trans_forward.2} parent=55 // pred_fallthru
        _
      // Predicated region
      $region61: #{relation_trans_forward.2} parent=55 // pred_check
        %p1190 = pneg %p200
      $region62: #{relation_trans_forward.2} parent=55 // pred_check_branch
        %1192 = sbr.rel (%p1190) target = $region64
      $region63: #{relation_trans_forward.2} parent=55 // pred_region
        %s1193 = smul.u32 24, %s20
        %p1194 = scmp.lt.s32.totalorder %s1193, 47
        %s1195 = scalar_select %p1194, %s1193, 47
        %s1196 = smul.addr %s1195, 4
        %s1197 = scalar_lea.vmem %s7, %s1196
      $region64: #{relation_trans_forward.2} parent=55 // pred_fallthru
        _
    $region56: #{relation_trans_forward.2} parent=5 // pred_fallthru
      _
  $region6: #{relation_trans_forward.2} parent=0 // loop_footer
    %s18 = sadd.s32 1, %s14
  $region7: #{relation_trans_forward.2} parent=0 // loop_footer_branch
    %13 = sbr.rel target = $region3
  $region8: #{relation_trans_forward.2} parent=0 // loop_exit
    _

</llo_original>
